<compile_context>
chip_gen: v7x
topology: tpu7x:2x2x1
jax: 0.10.0
libtpu: 0.0.40
codegen_flags: <defaults>
</compile_context>

<pallas_src>
import jax
import jax.numpy as jnp
from jax.experimental import pallas as pl
from jax.experimental.pallas import tpu as pltpu

# ------------------------- small config consistent with the module -------------------------
BATCH = 2
MAX_LEN = 4
VIEWS = 36                   # hard-coded by the module (labels[:, :, :36], view(B, T*36, -1))
FEATURE_SIZE = 32
HIDDEN_SIZE = 32
ANGLE_FEAT_SIZE = 8          # only used for the (identity) feature-dropout slice
TOP_K_FACTS = 3
K2 = TOP_K_FACTS * 2
NUM_LABELS = 10              # synthetic knowledge vocabulary
GLOVE_DIM = 300
KNOW_DIM = 100


# ------------------------------------ LSTM kernel -------------------------------------
def _lstm_recurrence_kernel(gx_ref, whh_ref, out_ref, h_state, c_state):
    """Whole LSTM recurrence in ONE kernel invocation (no per-timestep grid).

    gx_ref : (T, B, 4H)  precomputed x_t @ W_ih + (b_ih + b_hh), all timesteps
    whh_ref: (H, 4H)
    out_ref: (T, B, H)
    """
    T = gx_ref.shape[0]
    H = whh_ref.shape[0]
    h_state[...] = jnp.zeros_like(h_state)
    c_state[...] = jnp.zeros_like(c_state)

    @pl.loop(0, T)
    def _(t):
        # Only the hidden-state matmul remains on the serial dependence chain.
        gates = gx_ref[t] + jnp.dot(h_state[...], whh_ref[...],
                                    preferred_element_type=jnp.float32)   # (B, 4H)
        i_g = jax.nn.sigmoid(gates[:, 0 * H:1 * H])      # PyTorch gate order i,f,g,o
        f_g = jax.nn.sigmoid(gates[:, 1 * H:2 * H])
        g_g = jnp.tanh(gates[:, 2 * H:3 * H])
        o_g = jax.nn.sigmoid(gates[:, 3 * H:4 * H])
        c_new = f_g * c_state[...] + i_g * g_g
        h_new = o_g * jnp.tanh(c_new)
        c_state[...] = c_new
        h_state[...] = h_new
        out_ref[t] = h_new


def lstm_forward(x, w_ih, w_hh, b):
    """Single-layer unidirectional LSTM, batch_first, zero init state. x: (B,T,F) -> (B,T,H)."""
    B, T, F = x.shape
    H = w_hh.shape[0]
    # Input projection for ALL timesteps at once (time-independent), produced directly
    # in (T, B, 4H) layout so the kernel indexes time on the leading (untiled) axis.
    gx = jnp.einsum('btf,fg->tbg', x, w_ih) + b            # (T, B, 4H)
    h_seq = pl.pallas_call(
        _lstm_recurrence_kernel,
        out_shape=jax.ShapeDtypeStruct((T, B, H), jnp.float32),
        grid=(1,),
        in_specs=[
            pl.BlockSpec((T, B, 4 * H), lambda i: (0, 0, 0)),
            pl.BlockSpec((H, 4 * H), lambda i: (0, 0)),
        ],
        out_specs=pl.BlockSpec((T, B, H), lambda i: (0, 0, 0)),
        scratch_shapes=[pltpu.VMEM((B, H), jnp.float32),
                        pltpu.VMEM((B, H), jnp.float32)],
        compiler_params=pltpu.CompilerParams(dimension_semantics=("arbitrary",)),
    )(gx, w_hh)
    return jnp.transpose(h_seq, (1, 0, 2))                 # (B, T, H)


# ----------------- fused attention stand-in (PanoAttentionv2 + structural conv) -----------------
def _fusion_kernel(feats_ref, w_ref, b_ref, out_ref):
    # feats_ref: (1, T*36, C_all) = [ctx | img | glove | knowledge | structural]
    # w_ref    : (C_all, H)  pre-concatenated [wc; wf; wg; wk; struct_w @ ws]
    # b_ref    : (1, H)      att_b + struct_b * ws
    out_ref[0] = jnp.tanh(
        jnp.dot(feats_ref[0], w_ref[...], preferred_element_type=jnp.float32)
        + b_ref[...])


def fusion_forward(feats, w_all, b_all):
    """feats: (B, T*36, C_all) -> (B, T*36, H)."""
    B, M, C = feats.shape
    H = w_all.shape[1]
    return pl.pallas_call(
        _fusion_kernel,
        out_shape=jax.ShapeDtypeStruct((B, M, H), jnp.float32),
        grid=(B,),
        in_specs=[
            pl.BlockSpec((1, M, C), lambda b: (b, 0, 0)),
            pl.BlockSpec((C, H), lambda b: (0, 0)),
            pl.BlockSpec((1, H), lambda b: (0, 0)),
        ],
        out_specs=pl.BlockSpec((1, M, H), lambda b: (b, 0, 0)),
        compiler_params=pltpu.CompilerParams(dimension_semantics=("parallel",)),
    )(feats, w_all, b_all)


# -------------------------------- full forward (glue in plain JAX) --------------------------------
def pano_speaker_encoder_forward(params, action_embeds, img_feats,
                                 teacher_action_view_ids, detect_labels,
                                 detect_feats, distance_feats, area_feats,
                                 distance_labels, area_labels,
                                 all_glove_embeddings, all_detect_labels,
                                 lengths, already_dropfeat=False):
    # detect_labels / detect_feats / distance_* / area_* / lengths are unused by the reference forward.
    del detect_labels, detect_feats, distance_feats, area_feats
    del distance_labels, area_labels, lengths, teacher_action_view_ids, already_dropfeat
    B, T, _ = action_embeds.shape
    H = HIDDEN_SIZE

    # lstm(action_embeds) -> ctx   (dropouts are identity at inference)
    ctx = lstm_forward(action_embeds, params["lstm_wih"], params["lstm_whh"], params["lstm_b"])

    # --- PanoEntityKnowledge(all_detect_labels[:, :, :36]) via the pre-folded table ---
    det = all_detect_labels[:, :, :VIEWS]
    det = jnp.where(det < 0, 0, det)                      # -1 label -> zeros row (row 0)
    knowledge = jnp.take(params["knowledge_table"], det.reshape(-1), axis=0)
    knowledge = knowledge.reshape(B, T, VIEWS, KNOW_DIM)

    # --- structural labels: (B, T, 72) -> (B, T, 36, 2) float ---
    structural = all_detect_labels[:, :, VIEWS:].reshape(B, T, VIEWS, 2).astype(jnp.float32)

    # --- fused attention stand-in: one matmul over the concatenated channel axis ---
    # TODO(synk): PanoAttentionv2 definition was not provided; this is a documented stand-in
    # (per-view fused projection of ctx / img / glove / knowledge / structural to hidden_size);
    # teacher_action_view_ids is therefore unused.
    ctx_b = jnp.broadcast_to(ctx[:, :, None, :], (B, T, VIEWS, H))
    feats = jnp.concatenate(
        [ctx_b, img_feats, all_glove_embeddings, knowledge, structural], axis=-1)
    feats = feats.reshape(B, T * VIEWS, -1)               # (B, T*36, H+F+300+100+2)

    # Fold the structural 1x1 conv (2->1) and its bias into the fused weight / bias.
    w_all = jnp.concatenate(
        [params["att_wc"], params["att_wf"], params["att_wg"], params["att_wk"],
         jnp.dot(params["struct_w"], params["att_ws"])], axis=0)       # (466, H)
    b_all = params["att_b"] + params["struct_b"] * params["att_ws"]    # (1, H)

    x = fusion_forward(feats, w_all, b_all)               # (B, T*36, H)

    # --- post LSTM over the (T*36)-long per-view sequence (single kernel invocation) ---
    x = lstm_forward(x, params["post_wih"], params["post_whh"], params["post_b"])
    return x.reshape(B, T, VIEWS, H)


# ------------------------------------ deterministic params ------------------------------------
def init_params(key):
    ks = jax.random.split(key, 16)

    def w(k, shape, scale=0.08):
        return jax.random.normal(k, shape, dtype=jnp.float32) * scale

    H, F = HIDDEN_SIZE, FEATURE_SIZE
    fact_table = w(ks[15], (NUM_LABELS, TOP_K_FACTS, 2 * GLOVE_DIM), 0.5)
    fact_table = fact_table.at[0].set(0.0)   # index 0 == the "-1 -> zeros(top_k, 600)" entry
    kn_w = w(ks[6], (GLOVE_DIM, KNOW_DIM))   # Conv2d(300,100,1x1) as matmul
    kn_b = w(ks[7], (1, KNOW_DIM))

    # Pre-fold the knowledge module: conv(1x1) + mean over 2*top_k facts are linear, so
    # knowledge_table[l] = mean_K2(fact_table[l].reshape(K2,300)) @ kn_w + kn_b  -> (L, 100).
    fact_mean = jnp.mean(fact_table.reshape(NUM_LABELS, K2, GLOVE_DIM), axis=1)
    knowledge_table = jnp.dot(fact_mean, kn_w) + kn_b

    return {
        # LSTM biases are (b_ih + b_hh) summed, matching PyTorch at load time.
        "lstm_wih": w(ks[0], (F, 4 * H)),
        "lstm_whh": w(ks[1], (H, 4 * H)),
        "lstm_b":   w(ks[2], (1, 4 * H)),
        "post_wih": w(ks[3], (H, 4 * H)),
        "post_whh": w(ks[4], (H, 4 * H)),
        "post_b":   w(ks[5], (1, 4 * H)),
        "kn_w":     kn_w,
        "kn_b":     kn_b,
        "att_wc":   w(ks[8], (H, H)),
        "att_wf":   w(ks[9], (F, H)),
        "att_wg":   w(ks[10], (GLOVE_DIM, H)),
        "att_wk":   w(ks[11], (KNOW_DIM, H)),
        "att_ws":   w(ks[12], (1, H)),
        "att_b":    w(ks[13], (1, H)),
        "struct_w": w(ks[14], (2, 1)),                     # Conv2d(2,1,1x1) as matmul
        "struct_b": jnp.full((1, 1), 0.1, jnp.float32),
        "fact_table": fact_table,
        "knowledge_table": knowledge_table,
    }


if __name__ == "__main__":
    key = jax.random.PRNGKey(0)
    kp, ka, ki, kg, kd, ks, kt = jax.random.split(key, 7)
    params = init_params(kp)

    action_embeds = jax.random.normal(ka, (BATCH, MAX_LEN, FEATURE_SIZE), jnp.float32)
    img_feats = jax.random.normal(ki, (BATCH, MAX_LEN, VIEWS, FEATURE_SIZE), jnp.float32)
    all_glove_embeddings = jax.random.normal(kg, (BATCH, MAX_LEN, VIEWS, GLOVE_DIM), jnp.float32)
    det_part = jax.random.randint(kd, (BATCH, MAX_LEN, VIEWS), 0, NUM_LABELS, jnp.int32)
    struct_part = jax.random.randint(ks, (BATCH, MAX_LEN, VIEWS * 2), 0, 2, jnp.int32)
    all_detect_labels = jnp.concatenate([det_part, struct_part], axis=-1)     # (B, T, 108)
    teacher_action_view_ids = jax.random.randint(kt, (BATCH, MAX_LEN), 0, VIEWS, jnp.int32)

    fwd = jax.jit(pano_speaker_encoder_forward)
    out = fwd(params, action_embeds, img_feats, teacher_action_view_ids,
              None, None, None, None, None, None,
              all_glove_embeddings, all_detect_labels, None)
    out = jax.block_until_ready(out)
    assert out.shape == (BATCH, MAX_LEN, VIEWS, HIDDEN_SIZE), out.shape
    assert bool(jnp.all(jnp.isfinite(out)))
    print("KERNEL_OK")
</pallas_src>

<mosaic_0001>
module attributes {stable_mosaic.version = 11 : i64} {
  func.func @_lstm_recurrence_kernel(%arg0: i32, %arg1: memref<4x2x128xf32, #tpu.memory_space<vmem>>, %arg2: memref<32x128xf32, #tpu.memory_space<vmem>>, %arg3: memref<4x2x32xf32, #tpu.memory_space<vmem>>, %arg4: memref<2x32xf32, #tpu.memory_space<vmem>>, %arg5: memref<2x32xf32, #tpu.memory_space<vmem>>) attributes {dimension_semantics = [#tpu.dimension_semantics<arbitrary>], iteration_bounds = array<i64: 1>, scalar_prefetch = 0 : i64, scratch_operands = 2 : i64, tpu.core_type = #tpu.core_type<tc>, window_params = [{pipeline_mode = #tpu.pipeline_mode<synchronous>, transform_indices = @transform_0, window_bounds = array<i64: 4, 2, 128>}, {pipeline_mode = #tpu.pipeline_mode<synchronous>, transform_indices = @transform_1, window_bounds = array<i64: 32, 128>}, {pipeline_mode = #tpu.pipeline_mode<synchronous>, transform_indices = @transform_2, window_bounds = array<i64: 4, 2, 32>}]} {
    %cst = arith.constant 0.000000e+00 : f32
    %0 = vector.broadcast %cst : f32 to vector<2x32xf32>
    %c0 = arith.constant 0 : index
    %c0_0 = arith.constant 0 : index
    %1 = vector.load %arg4[%c0, %c0_0] : memref<2x32xf32, #tpu.memory_space<vmem>>, vector<2x32xf32>
    tpu.vector_store %arg4[%c0, %c0_0], %0 {strides = array<i32>} : memref<2x32xf32, #tpu.memory_space<vmem>>, vector<2x32xf32>,
    %cst_1 = arith.constant 0.000000e+00 : f32
    %2 = vector.broadcast %cst_1 : f32 to vector<2x32xf32>
    %c0_2 = arith.constant 0 : index
    %c0_3 = arith.constant 0 : index
    %3 = vector.load %arg5[%c0_2, %c0_3] : memref<2x32xf32, #tpu.memory_space<vmem>>, vector<2x32xf32>
    tpu.vector_store %arg5[%c0_2, %c0_3], %2 {strides = array<i32>} : memref<2x32xf32, #tpu.memory_space<vmem>>, vector<2x32xf32>,
    %c0_i32 = arith.constant 0 : i32
    %c4_i32 = arith.constant 4 : i32
    %4 = arith.addi %c0_i32, %c4_i32 : i32
    %c1_i32 = arith.constant 1 : i32
    scf.for %arg6 = %c0_i32 to %4 step %c1_i32  : i32 {
      %c1_i32_5 = arith.constant 1 : i32
      %5 = arith.muli %arg6, %c1_i32_5 : i32
      %c0_i32_6 = arith.constant 0 : i32
      %6 = arith.addi %c0_i32_6, %5 : i32
      %7 = arith.index_cast %6 : i32 to index
      %c0_7 = arith.constant 0 : index
      %c0_8 = arith.constant 0 : index
      %8 = vector.load %arg1[%7, %c0_7, %c0_8] : memref<4x2x128xf32, #tpu.memory_space<vmem>>, vector<1x2x128xf32>
      %9 = vector.shape_cast %8 : vector<1x2x128xf32> to vector<2x128xf32>
      %c0_9 = arith.constant 0 : index
      %c0_10 = arith.constant 0 : index
      %10 = vector.load %arg4[%c0_9, %c0_10] : memref<2x32xf32, #tpu.memory_space<vmem>>, vector<2x32xf32>
      %c0_11 = arith.constant 0 : index
      %c0_12 = arith.constant 0 : index
      %11 = vector.load %arg2[%c0_11, %c0_12] : memref<32x128xf32, #tpu.memory_space<vmem>>, vector<32x128xf32>
      %cst_13 = arith.constant dense<0.000000e+00> : vector<2x128xf32>
      %12 = tpu.matmul %10, %11, %cst_13 {dimension_numbers = #tpu.dot_dimension_numbers<[1], [0], [0], [1], [0, 0, 1, 1], [], []>} : vector<2x32xf32>, vector<32x128xf32>, vector<2x128xf32> -> vector<2x128xf32>
      %13 = arith.addf %9, %12 : vector<2x128xf32>
      %14 = vector.extract_strided_slice %13 {offsets = [0, 0], sizes = [2, 32], strides = [1, 1]} : vector<2x128xf32> to vector<2x32xf32>
      %15 = arith.negf %14 : vector<2x32xf32>
      %16 = math.exp %15 : vector<2x32xf32>
      %cst_14 = arith.constant 1.000000e+00 : f32
      %17 = vector.broadcast %cst_14 : f32 to vector<2x32xf32>
      %18 = arith.addf %17, %16 : vector<2x32xf32>
      %19 = arith.divf %17, %18 : vector<2x32xf32>
      %20 = vector.extract_strided_slice %13 {offsets = [0, 32], sizes = [2, 32], strides = [1, 1]} : vector<2x128xf32> to vector<2x32xf32>
      %21 = arith.negf %20 : vector<2x32xf32>
      %22 = math.exp %21 : vector<2x32xf32>
      %cst_15 = arith.constant 1.000000e+00 : f32
      %23 = vector.broadcast %cst_15 : f32 to vector<2x32xf32>
      %24 = arith.addf %23, %22 : vector<2x32xf32>
      %25 = arith.divf %23, %24 : vector<2x32xf32>
      %26 = vector.extract_strided_slice %13 {offsets = [0, 64], sizes = [2, 32], strides = [1, 1]} : vector<2x128xf32> to vector<2x32xf32>
      %27 = math.tanh %26 : vector<2x32xf32>
      %28 = vector.extract_strided_slice %13 {offsets = [0, 96], sizes = [2, 32], strides = [1, 1]} : vector<2x128xf32> to vector<2x32xf32>
      %29 = arith.negf %28 : vector<2x32xf32>
      %30 = math.exp %29 : vector<2x32xf32>
      %cst_16 = arith.constant 1.000000e+00 : f32
      %31 = vector.broadcast %cst_16 : f32 to vector<2x32xf32>
      %32 = arith.addf %31, %30 : vector<2x32xf32>
      %33 = arith.divf %31, %32 : vector<2x32xf32>
      %c0_17 = arith.constant 0 : index
      %c0_18 = arith.constant 0 : index
      %34 = vector.load %arg5[%c0_17, %c0_18] : memref<2x32xf32, #tpu.memory_space<vmem>>, vector<2x32xf32>
      %35 = arith.mulf %25, %34 : vector<2x32xf32>
      %36 = arith.mulf %19, %27 : vector<2x32xf32>
      %37 = arith.addf %35, %36 : vector<2x32xf32>
      %38 = math.tanh %37 : vector<2x32xf32>
      %39 = arith.mulf %33, %38 : vector<2x32xf32>
      %c0_19 = arith.constant 0 : index
      %c0_20 = arith.constant 0 : index
      %40 = vector.load %arg5[%c0_19, %c0_20] : memref<2x32xf32, #tpu.memory_space<vmem>>, vector<2x32xf32>
      tpu.vector_store %arg5[%c0_19, %c0_20], %37 {strides = array<i32>} : memref<2x32xf32, #tpu.memory_space<vmem>>, vector<2x32xf32>,
      %c0_21 = arith.constant 0 : index
      %c0_22 = arith.constant 0 : index
      %41 = vector.load %arg4[%c0_21, %c0_22] : memref<2x32xf32, #tpu.memory_space<vmem>>, vector<2x32xf32>
      tpu.vector_store %arg4[%c0_21, %c0_22], %39 {strides = array<i32>} : memref<2x32xf32, #tpu.memory_space<vmem>>, vector<2x32xf32>,
      %42 = arith.index_cast %6 : i32 to index
      %c0_23 = arith.constant 0 : index
      %c0_24 = arith.constant 0 : index
      %43 = vector.load %arg3[%42, %c0_23, %c0_24] : memref<4x2x32xf32, #tpu.memory_space<vmem>>, vector<1x2x32xf32>
      %44 = vector.shape_cast %43 : vector<1x2x32xf32> to vector<2x32xf32>
      %45 = vector.shape_cast %39 : vector<2x32xf32> to vector<1x2x32xf32>
      tpu.vector_store %arg3[%42, %c0_23, %c0_24], %45 {strides = array<i32>} : memref<4x2x32xf32, #tpu.memory_space<vmem>>, vector<1x2x32xf32>,
    }
    %c4_i32_4 = arith.constant 4 : i32
    return
  }
  func.func @transform_0(%arg0: i32) -> (i32, i32, i32) {
    %c0_i32 = arith.constant 0 : i32
    %c0_i32_0 = arith.constant 0 : i32
    %c0_i32_1 = arith.constant 0 : i32
    %c0_i32_2 = arith.constant 0 : i32
    return %c0_i32, %c0_i32_0, %c0_i32_1 : i32, i32, i32
  }
  func.func @transform_1(%arg0: i32) -> (i32, i32) {
    %c0_i32 = arith.constant 0 : i32
    %c0_i32_0 = arith.constant 0 : i32
    %c0_i32_1 = arith.constant 0 : i32
    return %c0_i32, %c0_i32_0 : i32, i32
  }
  func.func @transform_2(%arg0: i32) -> (i32, i32, i32) {
    %c0_i32 = arith.constant 0 : i32
    %c0_i32_0 = arith.constant 0 : i32
    %c0_i32_1 = arith.constant 0 : i32
    %c0_i32_2 = arith.constant 0 : i32
    return %c0_i32, %c0_i32_0, %c0_i32_1 : i32, i32, i32
  }
}

module attributes {stable_mosaic.version = 11 : i64} {
  func.func @_fusion_kernel(%arg0: i32, %arg1: memref<1x144x466xf32, #tpu.memory_space<vmem>>, %arg2: memref<466x32xf32, #tpu.memory_space<vmem>>, %arg3: memref<1x32xf32, #tpu.memory_space<vmem>>, %arg4: memref<1x144x32xf32, #tpu.memory_space<vmem>>) attributes {dimension_semantics = [#tpu.dimension_semantics<parallel>], iteration_bounds = array<i64: 2>, scalar_prefetch = 0 : i64, scratch_operands = 0 : i64, tpu.core_type = #tpu.core_type<tc>, window_params = [{transform_indices = @transform_0, window_bounds = array<i64: 1, 144, 466>}, {pipeline_mode = #tpu.pipeline_mode<synchronous>, transform_indices = @transform_1, window_bounds = array<i64: 466, 32>}, {pipeline_mode = #tpu.pipeline_mode<synchronous>, transform_indices = @transform_2, window_bounds = array<i64: 1, 32>}, {transform_indices = @transform_3, window_bounds = array<i64: 1, 144, 32>}]} {
    %c0 = arith.constant 0 : index
    %c0_0 = arith.constant 0 : index
    %c0_1 = arith.constant 0 : index
    %0 = vector.load %arg1[%c0, %c0_0, %c0_1] : memref<1x144x466xf32, #tpu.memory_space<vmem>>, vector<1x144x466xf32>
    %1 = vector.shape_cast %0 : vector<1x144x466xf32> to vector<144x466xf32>
    %c0_2 = arith.constant 0 : index
    %c0_3 = arith.constant 0 : index
    %2 = vector.load %arg2[%c0_2, %c0_3] : memref<466x32xf32, #tpu.memory_space<vmem>>, vector<466x32xf32>
    %cst = arith.constant dense<0.000000e+00> : vector<144x32xf32>
    %3 = tpu.matmul %1, %2, %cst {dimension_numbers = #tpu.dot_dimension_numbers<[1], [0], [0], [1], [0, 0, 1, 1], [], []>} : vector<144x466xf32>, vector<466x32xf32>, vector<144x32xf32> -> vector<144x32xf32>
    %c0_4 = arith.constant 0 : index
    %c0_5 = arith.constant 0 : index
    %4 = vector.load %arg3[%c0_4, %c0_5] : memref<1x32xf32, #tpu.memory_space<vmem>>, vector<1x32xf32>
    %5 = vector.broadcast %4 : vector<1x32xf32> to vector<144x32xf32>
    %6 = arith.addf %3, %5 : vector<144x32xf32>
    %7 = math.tanh %6 : vector<144x32xf32>
    %c0_6 = arith.constant 0 : index
    %c0_7 = arith.constant 0 : index
    %c0_8 = arith.constant 0 : index
    %8 = vector.load %arg4[%c0_6, %c0_7, %c0_8] : memref<1x144x32xf32, #tpu.memory_space<vmem>>, vector<1x144x32xf32>
    %9 = vector.shape_cast %8 : vector<1x144x32xf32> to vector<144x32xf32>
    %10 = vector.shape_cast %7 : vector<144x32xf32> to vector<1x144x32xf32>
    tpu.vector_store %arg4[%c0_6, %c0_7, %c0_8], %10 {strides = array<i32>} : memref<1x144x32xf32, #tpu.memory_space<vmem>>, vector<1x144x32xf32>,
    return
  }
  func.func @transform_0(%arg0: i32) -> (i32, i32, i32) {
    %c0_i32 = arith.constant 0 : i32
    %c0_i32_0 = arith.constant 0 : i32
    %c0_i32_1 = arith.constant 0 : i32
    return %arg0, %c0_i32, %c0_i32_0 : i32, i32, i32
  }
  func.func @transform_1(%arg0: i32) -> (i32, i32) {
    %c0_i32 = arith.constant 0 : i32
    %c0_i32_0 = arith.constant 0 : i32
    %c0_i32_1 = arith.constant 0 : i32
    return %c0_i32, %c0_i32_0 : i32, i32
  }
  func.func @transform_2(%arg0: i32) -> (i32, i32) {
    %c0_i32 = arith.constant 0 : i32
    %c0_i32_0 = arith.constant 0 : i32
    %c0_i32_1 = arith.constant 0 : i32
    return %c0_i32, %c0_i32_0 : i32, i32
  }
  func.func @transform_3(%arg0: i32) -> (i32, i32, i32) {
    %c0_i32 = arith.constant 0 : i32
    %c0_i32_0 = arith.constant 0 : i32
    %c0_i32_1 = arith.constant 0 : i32
    return %arg0, %c0_i32, %c0_i32_0 : i32, i32, i32
  }
}

module attributes {stable_mosaic.version = 11 : i64} {
  func.func @_lstm_recurrence_kernel(%arg0: i32, %arg1: memref<144x2x128xf32, #tpu.memory_space<vmem>>, %arg2: memref<32x128xf32, #tpu.memory_space<vmem>>, %arg3: memref<144x2x32xf32, #tpu.memory_space<vmem>>, %arg4: memref<2x32xf32, #tpu.memory_space<vmem>>, %arg5: memref<2x32xf32, #tpu.memory_space<vmem>>) attributes {dimension_semantics = [#tpu.dimension_semantics<arbitrary>], iteration_bounds = array<i64: 1>, scalar_prefetch = 0 : i64, scratch_operands = 2 : i64, tpu.core_type = #tpu.core_type<tc>, window_params = [{pipeline_mode = #tpu.pipeline_mode<synchronous>, transform_indices = @transform_0, window_bounds = array<i64: 144, 2, 128>}, {pipeline_mode = #tpu.pipeline_mode<synchronous>, transform_indices = @transform_1, window_bounds = array<i64: 32, 128>}, {pipeline_mode = #tpu.pipeline_mode<synchronous>, transform_indices = @transform_2, window_bounds = array<i64: 144, 2, 32>}]} {
    %cst = arith.constant 0.000000e+00 : f32
    %0 = vector.broadcast %cst : f32 to vector<2x32xf32>
    %c0 = arith.constant 0 : index
    %c0_0 = arith.constant 0 : index
    %1 = vector.load %arg4[%c0, %c0_0] : memref<2x32xf32, #tpu.memory_space<vmem>>, vector<2x32xf32>
    tpu.vector_store %arg4[%c0, %c0_0], %0 {strides = array<i32>} : memref<2x32xf32, #tpu.memory_space<vmem>>, vector<2x32xf32>,
    %cst_1 = arith.constant 0.000000e+00 : f32
    %2 = vector.broadcast %cst_1 : f32 to vector<2x32xf32>
    %c0_2 = arith.constant 0 : index
    %c0_3 = arith.constant 0 : index
    %3 = vector.load %arg5[%c0_2, %c0_3] : memref<2x32xf32, #tpu.memory_space<vmem>>, vector<2x32xf32>
    tpu.vector_store %arg5[%c0_2, %c0_3], %2 {strides = array<i32>} : memref<2x32xf32, #tpu.memory_space<vmem>>, vector<2x32xf32>,
    %c0_i32 = arith.constant 0 : i32
    %c144_i32 = arith.constant 144 : i32
    %4 = arith.addi %c0_i32, %c144_i32 : i32
    %c1_i32 = arith.constant 1 : i32
    scf.for %arg6 = %c0_i32 to %4 step %c1_i32  : i32 {
      %c1_i32_5 = arith.constant 1 : i32
      %5 = arith.muli %arg6, %c1_i32_5 : i32
      %c0_i32_6 = arith.constant 0 : i32
      %6 = arith.addi %c0_i32_6, %5 : i32
      %7 = arith.index_cast %6 : i32 to index
      %c0_7 = arith.constant 0 : index
      %c0_8 = arith.constant 0 : index
      %8 = vector.load %arg1[%7, %c0_7, %c0_8] : memref<144x2x128xf32, #tpu.memory_space<vmem>>, vector<1x2x128xf32>
      %9 = vector.shape_cast %8 : vector<1x2x128xf32> to vector<2x128xf32>
      %c0_9 = arith.constant 0 : index
      %c0_10 = arith.constant 0 : index
      %10 = vector.load %arg4[%c0_9, %c0_10] : memref<2x32xf32, #tpu.memory_space<vmem>>, vector<2x32xf32>
      %c0_11 = arith.constant 0 : index
      %c0_12 = arith.constant 0 : index
      %11 = vector.load %arg2[%c0_11, %c0_12] : memref<32x128xf32, #tpu.memory_space<vmem>>, vector<32x128xf32>
      %cst_13 = arith.constant dense<0.000000e+00> : vector<2x128xf32>
      %12 = tpu.matmul %10, %11, %cst_13 {dimension_numbers = #tpu.dot_dimension_numbers<[1], [0], [0], [1], [0, 0, 1, 1], [], []>} : vector<2x32xf32>, vector<32x128xf32>, vector<2x128xf32> -> vector<2x128xf32>
      %13 = arith.addf %9, %12 : vector<2x128xf32>
      %14 = vector.extract_strided_slice %13 {offsets = [0, 0], sizes = [2, 32], strides = [1, 1]} : vector<2x128xf32> to vector<2x32xf32>
      %15 = arith.negf %14 : vector<2x32xf32>
      %16 = math.exp %15 : vector<2x32xf32>
      %cst_14 = arith.constant 1.000000e+00 : f32
      %17 = vector.broadcast %cst_14 : f32 to vector<2x32xf32>
      %18 = arith.addf %17, %16 : vector<2x32xf32>
      %19 = arith.divf %17, %18 : vector<2x32xf32>
      %20 = vector.extract_strided_slice %13 {offsets = [0, 32], sizes = [2, 32], strides = [1, 1]} : vector<2x128xf32> to vector<2x32xf32>
      %21 = arith.negf %20 : vector<2x32xf32>
      %22 = math.exp %21 : vector<2x32xf32>
      %cst_15 = arith.constant 1.000000e+00 : f32
      %23 = vector.broadcast %cst_15 : f32 to vector<2x32xf32>
      %24 = arith.addf %23, %22 : vector<2x32xf32>
      %25 = arith.divf %23, %24 : vector<2x32xf32>
      %26 = vector.extract_strided_slice %13 {offsets = [0, 64], sizes = [2, 32], strides = [1, 1]} : vector<2x128xf32> to vector<2x32xf32>
      %27 = math.tanh %26 : vector<2x32xf32>
      %28 = vector.extract_strided_slice %13 {offsets = [0, 96], sizes = [2, 32], strides = [1, 1]} : vector<2x128xf32> to vector<2x32xf32>
      %29 = arith.negf %28 : vector<2x32xf32>
      %30 = math.exp %29 : vector<2x32xf32>
      %cst_16 = arith.constant 1.000000e+00 : f32
      %31 = vector.broadcast %cst_16 : f32 to vector<2x32xf32>
      %32 = arith.addf %31, %30 : vector<2x32xf32>
      %33 = arith.divf %31, %32 : vector<2x32xf32>
      %c0_17 = arith.constant 0 : index
      %c0_18 = arith.constant 0 : index
      %34 = vector.load %arg5[%c0_17, %c0_18] : memref<2x32xf32, #tpu.memory_space<vmem>>, vector<2x32xf32>
      %35 = arith.mulf %25, %34 : vector<2x32xf32>
      %36 = arith.mulf %19, %27 : vector<2x32xf32>
      %37 = arith.addf %35, %36 : vector<2x32xf32>
      %38 = math.tanh %37 : vector<2x32xf32>
      %39 = arith.mulf %33, %38 : vector<2x32xf32>
      %c0_19 = arith.constant 0 : index
      %c0_20 = arith.constant 0 : index
      %40 = vector.load %arg5[%c0_19, %c0_20] : memref<2x32xf32, #tpu.memory_space<vmem>>, vector<2x32xf32>
      tpu.vector_store %arg5[%c0_19, %c0_20], %37 {strides = array<i32>} : memref<2x32xf32, #tpu.memory_space<vmem>>, vector<2x32xf32>,
      %c0_21 = arith.constant 0 : index
      %c0_22 = arith.constant 0 : index
      %41 = vector.load %arg4[%c0_21, %c0_22] : memref<2x32xf32, #tpu.memory_space<vmem>>, vector<2x32xf32>
      tpu.vector_store %arg4[%c0_21, %c0_22], %39 {strides = array<i32>} : memref<2x32xf32, #tpu.memory_space<vmem>>, vector<2x32xf32>,
      %42 = arith.index_cast %6 : i32 to index
      %c0_23 = arith.constant 0 : index
      %c0_24 = arith.constant 0 : index
      %43 = vector.load %arg3[%42, %c0_23, %c0_24] : memref<144x2x32xf32, #tpu.memory_space<vmem>>, vector<1x2x32xf32>
      %44 = vector.shape_cast %43 : vector<1x2x32xf32> to vector<2x32xf32>
      %45 = vector.shape_cast %39 : vector<2x32xf32> to vector<1x2x32xf32>
      tpu.vector_store %arg3[%42, %c0_23, %c0_24], %45 {strides = array<i32>} : memref<144x2x32xf32, #tpu.memory_space<vmem>>, vector<1x2x32xf32>,
    }
    %c144_i32_4 = arith.constant 144 : i32
    return
  }
  func.func @transform_0(%arg0: i32) -> (i32, i32, i32) {
    %c0_i32 = arith.constant 0 : i32
    %c0_i32_0 = arith.constant 0 : i32
    %c0_i32_1 = arith.constant 0 : i32
    %c0_i32_2 = arith.constant 0 : i32
    return %c0_i32, %c0_i32_0, %c0_i32_1 : i32, i32, i32
  }
  func.func @transform_1(%arg0: i32) -> (i32, i32) {
    %c0_i32 = arith.constant 0 : i32
    %c0_i32_0 = arith.constant 0 : i32
    %c0_i32_1 = arith.constant 0 : i32
    return %c0_i32, %c0_i32_0 : i32, i32
  }
  func.func @transform_2(%arg0: i32) -> (i32, i32, i32) {
    %c0_i32 = arith.constant 0 : i32
    %c0_i32_0 = arith.constant 0 : i32
    %c0_i32_1 = arith.constant 0 : i32
    %c0_i32_2 = arith.constant 0 : i32
    return %c0_i32, %c0_i32_0, %c0_i32_1 : i32, i32, i32
  }
}

</mosaic_0001>

<llo_original>
// kernel: pano_speaker_encoder_forward.3
$region0: #{pano_speaker_encoder_forward.3}
  #allocation0 [shape = 'u32[]', space=smem, size = 0x4, offset = 0x4, fixed_abs, tag = 'smem constant byte address 0x4 - core index']
  #allocation1 [shape = 'u32[144,128]{1,0:T(1,128)}', space=vmem, size = 0x12000, scoped, tag = 'internal scratch']
  #allocation2 [shape = 'f32[2,32]{1,0:T(2,128)}', space=vmem, size = 0x400, scoped, tag = 'scratch operand']
  #allocation3 [shape = 'f32[2,32]{1,0:T(2,128)}', space=vmem, size = 0x400, scoped, tag = 'scratch operand']
  %s0 = inlined_call_operand.vmem [shape: f32[4,2,128], index: 0, kind: input, shape index: {}]
  %s1 = inlined_call_operand.vmem [shape: f32[32,128], index: 1, kind: input, shape index: {}]
  %s2 = inlined_call_operand.vmem [shape: f32[4,2,32], index: 2, kind: output, shape index: {}]
  %s3 = sld [smem:[#allocation0]]
  $region25: #{pano_speaker_encoder_forward.3} parent=0
    _
  %s5 = ssub.s32 1, %s3
  %s6 = scalar_select 0, %s5, %s3
  // Predicated region
  $region2: #{pano_speaker_encoder_forward.3} parent=0 // pred_check
    _
  $region3: #{pano_speaker_encoder_forward.3} parent=0 // pred_check_branch
    %8 = sbr.rel (0) target = $region5
  $region4: #{pano_speaker_encoder_forward.3} parent=0 // pred_region
    _
  $region5: #{pano_speaker_encoder_forward.3} parent=0 // pred_fallthru
    _
  // Predicated region
  $region6: #{pano_speaker_encoder_forward.3} parent=0 // pred_check
    _
  $region7: #{pano_speaker_encoder_forward.3} parent=0 // pred_check_branch
    %10 = sbr.rel (0) target = $region9
  $region8: #{pano_speaker_encoder_forward.3} parent=0 // pred_region
    _
  $region9: #{pano_speaker_encoder_forward.3} parent=0 // pred_fallthru
    _
  %vm11 = vcmask 254976
  %12 = vst.msk [vmem:[#allocation2] sm:$0x3] %vm11, 0.0
  %13 = vst.msk [vmem:[#allocation3] sm:$0x3] %vm11, 0.0
  loop: start=0, step=1, limit=4
  $region10: #{pano_speaker_encoder_forward.3} parent=0 // loop_pre_header
    _
  $region11: #{pano_speaker_encoder_forward.3} parent=0 // loop_header
    %s15 = sphi 0, %s19
    %p16 = scmp.ge.s32.totalorder %s15, 4
  $region12: #{pano_speaker_encoder_forward.3} parent=0 // loop_header_branch
    %18 = sbr.rel (%p16) target = $region16
  $region13: #{pano_speaker_encoder_forward.3} parent=0 // loop_body
    %s20 = smul.u32 %s15, 2
    %s21 = scalar_lea.vmem %s0, %s20
    %v22 = vld [vmem:[%s21] sm:$0x3]
    %v23 = vld [vmem:[#allocation2] sm:$0x3]
    %v24 = vld [vmem:[%s1] sm:$0xff]
    %v25 = vld [vmem:[%s1 + $0x8] sm:$0xff]
    %v26 = vld [vmem:[%s1 + $0x10] sm:$0xff]
    %v27 = vld [vmem:[%s1 + $0x18] sm:$0xff]
    %vm28 = vcmask 261120
    %v30 = vsel %vm28, %v23, 0
    %32 = vmatprep.subr.mxu0 0.0
    %33 = vmatpush1.msra.mxu0 %v24
    %34 = vmatprep.subr.mxu0 0.0
    %35 = vmatpush1.msra.mxu0 %v25
    %36 = vmatprep.subr.mxu0 0.0
    %37 = vmatpush1.msra.mxu0 %v26
    %38 = vmatprep.subr.mxu0 0.0
    %39 = vmatpush1.msra.mxu0 %v27
    %40 = vmatprep.subr.mxu0 0.0
    %41 = vmatpush1.msra.mxu0 0.0
    %42 = vmatprep.subr.mxu0 0.0
    %43 = vmatpush1.msra.mxu0 0.0
    %44 = vmatprep.subr.mxu0 0.0
    %45 = vmatpush1.msra.mxu0 0.0
    %46 = vmatprep.subr.mxu0 0.0
    %47 = vmatpush1.msra.mxu0 0.0
    %48 = vmatprep.subr.mxu0 0.0
    %49 = vmatpush1.msra.mxu0 0.0
    %50 = vmatprep.subr.mxu0 0.0
    %51 = vmatpush1.msra.mxu0 0.0
    %52 = vmatprep.subr.mxu0 0.0
    %53 = vmatpush1.msra.mxu0 0.0
    %54 = vmatprep.subr.mxu0 0.0
    %55 = vmatpush1.msra.mxu0 0.0
    %56 = vmatprep.subr.mxu0 0.0
    %57 = vmatpush1.msra.mxu0 0.0
    %58 = vmatprep.subr.mxu0 0.0
    %59 = vmatpush1.msra.mxu0 0.0
    %60 = vmatprep.subr.mxu0 0.0
    %61 = vmatpush1.msra.mxu0 0.0
    %62 = vmatprep.subr.mxu0 0.0
    %63 = vmatpush1.msra.mxu0 0.0
    %64 = vmatprep.subr.mxu0 0.0
    %65 = vmatpush1.msra.mxu0 0.0
    %66 = vmatprep.subr.mxu0 0.0
    %67 = vmatpush1.msra.mxu0 0.0
    %68 = vmatprep.subr.mxu0 0.0
    %69 = vmatpush1.msra.mxu0 0.0
    %70 = vmatprep.subr.mxu0 0.0
    %71 = vmatpush1.msra.mxu0 0.0
    %72 = vmatprep.subr.mxu0 0.0
    %73 = vmatpush1.msra.mxu0 0.0
    %74 = vmatprep.subr.mxu0 0.0
    %75 = vmatpush1.msra.mxu0 0.0
    %76 = vmatprep.subr.mxu0 0.0
    %77 = vmatpush1.msra.mxu0 0.0
    %78 = vmatprep.subr.mxu0 0.0
    %79 = vmatpush1.msra.mxu0 0.0
    %80 = vmatprep.subr.mxu0 0.0
    %81 = vmatpush1.msra.mxu0 0.0
    %82 = vmatprep.subr.mxu0 0.0
    %83 = vmatpush1.msra.mxu0 0.0
    %84 = vmatprep.subr.mxu0 0.0
    %85 = vmatpush1.msra.mxu0 0.0
    %86 = vmatprep.subr.mxu0 0.0
    %87 = vmatpush1.msra.mxu0 0.0
    %88 = vmatprep.subr.mxu0 0.0
    %89 = vmatpush1.msra.mxu0 0.0
    %90 = vmatprep.subr.mxu0 0.0
    %91 = vmatpush1.msra.mxu0 0.0
    %92 = vmatprep.subr.mxu0 0.0
    %93 = vmatpush1.msra.mxu0 0.0
    %94 = vmatprep.subr.mxu0 0.0
    %95 = vmatpush1.msra.mxu0 0.0
    %96 = vmatprep.mubr.f32.mxu0 0.0
    %97 = vmatmul.mubr.f32.gmra.mrb[0].mxu0 %v30
    %v98 = vpop.f32.mrb[0].mxu0
    %v99 = vadd.f32 0.0, %v98
    %v100 = vpop.f32.mrb[0].mxu0
    %101 = vdwg.mxu0
    %v102 = vadd.f32 %v22, %v99
    %v103 = vxor.u32 %v102, 2147483648
    %v104 = vmul.f32 %v103, 1.442695
    %v105 = vpow.pop %v104
    %v106 = vadd.f32 %v105, 1.0
    %v107 = vrcp.pop %v106
    %v108 = vmul.f32 1.0, %v107
    %v109 = vtanh.pop %v102
    %v110 = vld [vmem:[#allocation3] sm:$0x3]
    %112 = vrot.lane.b32.xlu0 %v110, 32
    %v113 = vpop.permute.xlu0 %112
    %v115 = vmul.f32 %v108, %v113
    %117 = vrot.lane.b32.xlu0 %v109, 64
    %v118 = vpop.permute.xlu0 %117
    %v120 = vmul.f32 %v108, %v118
    %122 = vrot.lane.b32.xlu0 %v120, 32
    %v123 = vpop.permute.xlu0 %122
    %v125 = vadd.f32 %v115, %v123
    %v126 = vtanh.pop %v125
    %128 = vrot.lane.b32.xlu0 %v126, 64
    %v129 = vpop.permute.xlu0 %128
    %v131 = vmul.f32 %v108, %v129
    %133 = vrot.lane.b32.xlu0 %v125, 96
    %v134 = vpop.permute.xlu0 %133
    %136 = vst.msk [vmem:[#allocation3] sm:$0x3] %vm11, %v134
    %138 = vrot.lane.b32.xlu0 %v131, 32
    %v139 = vpop.permute.xlu0 %138
    %141 = vst.msk [vmem:[#allocation2] sm:$0x3] %vm11, %v139
    %s142 = scalar_lea.vmem %s2, %s20
    %143 = vst.msk [vmem:[%s142] sm:$0x3] %vm11, %v139
  $region14: #{pano_speaker_encoder_forward.3} parent=0 // loop_footer
    %s19 = sadd.s32 1, %s15
  $region15: #{pano_speaker_encoder_forward.3} parent=0 // loop_footer_branch
    %14 = sbr.rel target = $region11
  $region16: #{pano_speaker_encoder_forward.3} parent=0 // loop_exit
    _
  // Predicated region
  $region17: #{pano_speaker_encoder_forward.3} parent=0 // pred_check
    _
  $region18: #{pano_speaker_encoder_forward.3} parent=0 // pred_check_branch
    %145 = sbr.rel (0) target = $region20
  $region19: #{pano_speaker_encoder_forward.3} parent=0 // pred_region
    _
  $region20: #{pano_speaker_encoder_forward.3} parent=0 // pred_fallthru
    _
  // Predicated region
  $region21: #{pano_speaker_encoder_forward.3} parent=0 // pred_check
    _
  $region22: #{pano_speaker_encoder_forward.3} parent=0 // pred_check_branch
    %147 = sbr.rel (0) target = $region24
  $region23: #{pano_speaker_encoder_forward.3} parent=0 // pred_region
    _
  $region24: #{pano_speaker_encoder_forward.3} parent=0 // pred_fallthru
    _

// kernel: pano_speaker_encoder_forward.5
$region0: #{pano_speaker_encoder_forward.5}
  #allocation0 [shape = 'u32[]', space=smem, size = 0x4, offset = 0x4, fixed_abs, tag = 'smem constant byte address 0x4 - core index']
  #allocation1 [shape = 'u32[144,128]{1,0:T(1,128)}', space=vmem, size = 0x12000, scoped, tag = 'internal scratch']
  #allocation2 [shape = 'f32[2,32]{1,0:T(2,128)}', space=vmem, size = 0x400, scoped, tag = 'scratch operand']
  #allocation3 [shape = 'f32[2,32]{1,0:T(2,128)}', space=vmem, size = 0x400, scoped, tag = 'scratch operand']
  %s0 = inlined_call_operand.vmem [shape: f32[144,2,128], index: 0, kind: input, shape index: {}]
  %s1 = inlined_call_operand.vmem [shape: f32[32,128], index: 1, kind: input, shape index: {}]
  %s2 = inlined_call_operand.vmem [shape: f32[144,2,32], index: 2, kind: output, shape index: {}]
  %s3 = sld [smem:[#allocation0]]
  $region25: #{pano_speaker_encoder_forward.5} parent=0
    _
  %s5 = ssub.s32 1, %s3
  %s6 = scalar_select 0, %s5, %s3
  // Predicated region
  $region2: #{pano_speaker_encoder_forward.5} parent=0 // pred_check
    _
  $region3: #{pano_speaker_encoder_forward.5} parent=0 // pred_check_branch
    %8 = sbr.rel (0) target = $region5
  $region4: #{pano_speaker_encoder_forward.5} parent=0 // pred_region
    _
  $region5: #{pano_speaker_encoder_forward.5} parent=0 // pred_fallthru
    _
  // Predicated region
  $region6: #{pano_speaker_encoder_forward.5} parent=0 // pred_check
    _
  $region7: #{pano_speaker_encoder_forward.5} parent=0 // pred_check_branch
    %10 = sbr.rel (0) target = $region9
  $region8: #{pano_speaker_encoder_forward.5} parent=0 // pred_region
    _
  $region9: #{pano_speaker_encoder_forward.5} parent=0 // pred_fallthru
    _
  %vm11 = vcmask 254976
  %12 = vst.msk [vmem:[#allocation2] sm:$0x3] %vm11, 0.0
  %13 = vst.msk [vmem:[#allocation3] sm:$0x3] %vm11, 0.0
  loop: start=0, step=1, limit=144
  $region10: #{pano_speaker_encoder_forward.5} parent=0 // loop_pre_header
    _
  $region11: #{pano_speaker_encoder_forward.5} parent=0 // loop_header
    %s15 = sphi 0, %s19
    %p16 = scmp.ge.s32.totalorder %s15, 144
  $region12: #{pano_speaker_encoder_forward.5} parent=0 // loop_header_branch
    %18 = sbr.rel (%p16) target = $region16
  $region13: #{pano_speaker_encoder_forward.5} parent=0 // loop_body
    %s20 = smul.u32 %s15, 2
    %s21 = scalar_lea.vmem %s0, %s20
    %v22 = vld [vmem:[%s21] sm:$0x3]
    %v23 = vld [vmem:[#allocation2] sm:$0x3]
    %v24 = vld [vmem:[%s1] sm:$0xff]
    %v25 = vld [vmem:[%s1 + $0x8] sm:$0xff]
    %v26 = vld [vmem:[%s1 + $0x10] sm:$0xff]
    %v27 = vld [vmem:[%s1 + $0x18] sm:$0xff]
    %vm28 = vcmask 261120
    %v30 = vsel %vm28, %v23, 0
    %32 = vmatprep.subr.mxu0 0.0
    %33 = vmatpush1.msra.mxu0 %v24
    %34 = vmatprep.subr.mxu0 0.0
    %35 = vmatpush1.msra.mxu0 %v25
    %36 = vmatprep.subr.mxu0 0.0
    %37 = vmatpush1.msra.mxu0 %v26
    %38 = vmatprep.subr.mxu0 0.0
    %39 = vmatpush1.msra.mxu0 %v27
    %40 = vmatprep.subr.mxu0 0.0
    %41 = vmatpush1.msra.mxu0 0.0
    %42 = vmatprep.subr.mxu0 0.0
    %43 = vmatpush1.msra.mxu0 0.0
    %44 = vmatprep.subr.mxu0 0.0
    %45 = vmatpush1.msra.mxu0 0.0
    %46 = vmatprep.subr.mxu0 0.0
    %47 = vmatpush1.msra.mxu0 0.0
    %48 = vmatprep.subr.mxu0 0.0
    %49 = vmatpush1.msra.mxu0 0.0
    %50 = vmatprep.subr.mxu0 0.0
    %51 = vmatpush1.msra.mxu0 0.0
    %52 = vmatprep.subr.mxu0 0.0
    %53 = vmatpush1.msra.mxu0 0.0
    %54 = vmatprep.subr.mxu0 0.0
    %55 = vmatpush1.msra.mxu0 0.0
    %56 = vmatprep.subr.mxu0 0.0
    %57 = vmatpush1.msra.mxu0 0.0
    %58 = vmatprep.subr.mxu0 0.0
    %59 = vmatpush1.msra.mxu0 0.0
    %60 = vmatprep.subr.mxu0 0.0
    %61 = vmatpush1.msra.mxu0 0.0
    %62 = vmatprep.subr.mxu0 0.0
    %63 = vmatpush1.msra.mxu0 0.0
    %64 = vmatprep.subr.mxu0 0.0
    %65 = vmatpush1.msra.mxu0 0.0
    %66 = vmatprep.subr.mxu0 0.0
    %67 = vmatpush1.msra.mxu0 0.0
    %68 = vmatprep.subr.mxu0 0.0
    %69 = vmatpush1.msra.mxu0 0.0
    %70 = vmatprep.subr.mxu0 0.0
    %71 = vmatpush1.msra.mxu0 0.0
    %72 = vmatprep.subr.mxu0 0.0
    %73 = vmatpush1.msra.mxu0 0.0
    %74 = vmatprep.subr.mxu0 0.0
    %75 = vmatpush1.msra.mxu0 0.0
    %76 = vmatprep.subr.mxu0 0.0
    %77 = vmatpush1.msra.mxu0 0.0
    %78 = vmatprep.subr.mxu0 0.0
    %79 = vmatpush1.msra.mxu0 0.0
    %80 = vmatprep.subr.mxu0 0.0
    %81 = vmatpush1.msra.mxu0 0.0
    %82 = vmatprep.subr.mxu0 0.0
    %83 = vmatpush1.msra.mxu0 0.0
    %84 = vmatprep.subr.mxu0 0.0
    %85 = vmatpush1.msra.mxu0 0.0
    %86 = vmatprep.subr.mxu0 0.0
    %87 = vmatpush1.msra.mxu0 0.0
    %88 = vmatprep.subr.mxu0 0.0
    %89 = vmatpush1.msra.mxu0 0.0
    %90 = vmatprep.subr.mxu0 0.0
    %91 = vmatpush1.msra.mxu0 0.0
    %92 = vmatprep.subr.mxu0 0.0
    %93 = vmatpush1.msra.mxu0 0.0
    %94 = vmatprep.subr.mxu0 0.0
    %95 = vmatpush1.msra.mxu0 0.0
    %96 = vmatprep.mubr.f32.mxu0 0.0
    %97 = vmatmul.mubr.f32.gmra.mrb[0].mxu0 %v30
    %v98 = vpop.f32.mrb[0].mxu0
    %v99 = vadd.f32 0.0, %v98
    %v100 = vpop.f32.mrb[0].mxu0
    %101 = vdwg.mxu0
    %v102 = vadd.f32 %v22, %v99
    %v103 = vxor.u32 %v102, 2147483648
    %v104 = vmul.f32 %v103, 1.442695
    %v105 = vpow.pop %v104
    %v106 = vadd.f32 %v105, 1.0
    %v107 = vrcp.pop %v106
    %v108 = vmul.f32 1.0, %v107
    %v109 = vtanh.pop %v102
    %v110 = vld [vmem:[#allocation3] sm:$0x3]
    %112 = vrot.lane.b32.xlu0 %v110, 32
    %v113 = vpop.permute.xlu0 %112
    %v115 = vmul.f32 %v108, %v113
    %117 = vrot.lane.b32.xlu0 %v109, 64
    %v118 = vpop.permute.xlu0 %117
    %v120 = vmul.f32 %v108, %v118
    %122 = vrot.lane.b32.xlu0 %v120, 32
    %v123 = vpop.permute.xlu0 %122
    %v125 = vadd.f32 %v115, %v123
    %v126 = vtanh.pop %v125
    %128 = vrot.lane.b32.xlu0 %v126, 64
    %v129 = vpop.permute.xlu0 %128
    %v131 = vmul.f32 %v108, %v129
    %133 = vrot.lane.b32.xlu0 %v125, 96
    %v134 = vpop.permute.xlu0 %133
    %136 = vst.msk [vmem:[#allocation3] sm:$0x3] %vm11, %v134
    %138 = vrot.lane.b32.xlu0 %v131, 32
    %v139 = vpop.permute.xlu0 %138
    %141 = vst.msk [vmem:[#allocation2] sm:$0x3] %vm11, %v139
    %s142 = scalar_lea.vmem %s2, %s20
    %143 = vst.msk [vmem:[%s142] sm:$0x3] %vm11, %v139
  $region14: #{pano_speaker_encoder_forward.5} parent=0 // loop_footer
    %s19 = sadd.s32 1, %s15
  $region15: #{pano_speaker_encoder_forward.5} parent=0 // loop_footer_branch
    %14 = sbr.rel target = $region11
  $region16: #{pano_speaker_encoder_forward.5} parent=0 // loop_exit
    _
  // Predicated region
  $region17: #{pano_speaker_encoder_forward.5} parent=0 // pred_check
    _
  $region18: #{pano_speaker_encoder_forward.5} parent=0 // pred_check_branch
    %145 = sbr.rel (0) target = $region20
  $region19: #{pano_speaker_encoder_forward.5} parent=0 // pred_region
    _
  $region20: #{pano_speaker_encoder_forward.5} parent=0 // pred_fallthru
    _
  // Predicated region
  $region21: #{pano_speaker_encoder_forward.5} parent=0 // pred_check
    _
  $region22: #{pano_speaker_encoder_forward.5} parent=0 // pred_check_branch
    %147 = sbr.rel (0) target = $region24
  $region23: #{pano_speaker_encoder_forward.5} parent=0 // pred_region
    _
  $region24: #{pano_speaker_encoder_forward.5} parent=0 // pred_fallthru
    _

// kernel: pano_speaker_encoder_forward.4
$region0: #{pano_speaker_encoder_forward.4}
  #allocation0 [shape = 'u32[]', space=smem, size = 0x4, offset = 0x4, fixed_abs, tag = 'smem constant byte address 0x4 - core index']
  #allocation1 [shape = 'u32[144,128]{1,0:T(1,128)}', space=vmem, size = 0x12000, scoped, tag = 'internal scratch']
  %s0 = inlined_call_operand.vmem [shape: f32[2,144,466], index: 0, kind: input, shape index: {}]
  %s1 = inlined_call_operand.vmem [shape: f32[466,32], index: 1, kind: input, shape index: {}]
  %s2 = inlined_call_operand.vmem [shape: f32[1,32], index: 2, kind: input, shape index: {}]
  %s3 = inlined_call_operand.vmem [shape: f32[2,144,32], index: 3, kind: output, shape index: {}]
  %s4 = sld [smem:[#allocation0]]
  $region45: #{pano_speaker_encoder_forward.4} parent=0
    _
  %s6 = ssub.s32 1, %s4
  %s7 = scalar_select 0, %s6, %s4
  loop: start=0, step=1, limit=4
  $region2: #{pano_speaker_encoder_forward.4} parent=0 // loop_pre_header
    _
  $region3: #{pano_speaker_encoder_forward.4} parent=0 // loop_header
    %s9 = sphi 0, %s13
    %p10 = scmp.ge.s32.totalorder %s9, 4
    %s19 = sphi 0, %s21
    %s22 = sphi 0, %s19
    %s23 = sphi 0, %s22
    %s39 = sphi 0, %s23
    %s43 = sphi 0, %s43
    %s45 = sphi 0, %s43
    %s46 = sphi 0, %s45
    %s60 = sphi 0, %s46
    %s64 = sphi 0, %s64
    %s66 = sphi 0, %s64
    %s67 = sphi 0, %s66
    %s81 = sphi 0, %s67
    %s87 = sphi 0, %s89
    %s90 = sphi 0, %s87
    %s91 = sphi 0, %s90
    %s107 = sphi 0, %s91
  $region4: #{pano_speaker_encoder_forward.4} parent=0 // loop_header_branch
    %12 = sbr.rel (%p10) target = $region8
  $region5: #{pano_speaker_encoder_forward.4} parent=0 // loop_body
    %s14 = ssub.s32 %s9, 1
    %s15 = ssub.s32 %s9, 2
    %s16 = sadd.s32 %s9, 1
    %s17 = ssub.s32 %s9, %s16
    %p18 = scmp.eq.s32.totalorder %s17, 0
    %s20 = sadd.s32 %s19, 1
    %s21 = scalar_select %p18, %s19, %s20
    %p24 = pneg %p18
    %p25 = scmp.eq.s32.totalorder %s9, 1
    %p26 = por %p24, %p25
    %p27 = scmp.ne.s32.totalorder %s19, %s22
    %p28 = scmp.eq.s32.totalorder %s9, 0
    %p29 = por %p27, %p28
    %p30 = scmp.ne.s32.totalorder %s19, %s22
    %p31 = scmp.eq.s32.totalorder %s14, 1
    %p32 = por %p30, %p31
    %p33 = scmp.ne.s32.totalorder %s22, %s23
    %p34 = scmp.eq.s32.totalorder %s14, 0
    %p35 = por %p33, %p34
    %p36 = scmp.ne.s32.totalorder %s22, %s23
    %p37 = scmp.eq.s32.totalorder %s15, 1
    %p38 = por %p36, %p37
    %p40 = scmp.ne.s32.totalorder %s23, %s39
    %p41 = scmp.eq.s32.totalorder %s15, 0
    %p42 = por %p40, %p41
    %s44 = sadd.s32 %s43, 1
    %p47 = scmp.eq.s32.totalorder %s9, 1
    %p48 = scmp.ne.s32.totalorder %s43, %s45
    %p49 = scmp.eq.s32.totalorder %s9, 0
    %p50 = por %p48, %p49
    %p51 = scmp.ne.s32.totalorder %s43, %s45
    %p52 = scmp.eq.s32.totalorder %s14, 1
    %p53 = por %p51, %p52
    %p54 = scmp.ne.s32.totalorder %s45, %s46
    %p55 = scmp.eq.s32.totalorder %s14, 0
    %p56 = por %p54, %p55
    %p57 = scmp.ne.s32.totalorder %s45, %s46
    %p58 = scmp.eq.s32.totalorder %s15, 1
    %p59 = por %p57, %p58
    %p61 = scmp.ne.s32.totalorder %s46, %s60
    %p62 = scmp.eq.s32.totalorder %s15, 0
    %p63 = por %p61, %p62
    %s65 = sadd.s32 %s64, 1
    %p68 = scmp.eq.s32.totalorder %s9, 1
    %p69 = scmp.ne.s32.totalorder %s64, %s66
    %p70 = scmp.eq.s32.totalorder %s9, 0
    %p71 = por %p69, %p70
    %p72 = scmp.ne.s32.totalorder %s64, %s66
    %p73 = scmp.eq.s32.totalorder %s14, 1
    %p74 = por %p72, %p73
    %p75 = scmp.ne.s32.totalorder %s66, %s67
    %p76 = scmp.eq.s32.totalorder %s14, 0
    %p77 = por %p75, %p76
    %p78 = scmp.ne.s32.totalorder %s66, %s67
    %p79 = scmp.eq.s32.totalorder %s15, 1
    %p80 = por %p78, %p79
    %p82 = scmp.ne.s32.totalorder %s67, %s81
    %p83 = scmp.eq.s32.totalorder %s15, 0
    %p84 = por %p82, %p83
    %s85 = ssub.s32 %s9, %s16
    %p86 = scmp.eq.s32.totalorder %s85, 0
    %s88 = sadd.s32 %s87, 1
    %s89 = scalar_select %p86, %s87, %s88
    %p92 = pneg %p86
    %p93 = scmp.eq.s32.totalorder %s9, 1
    %p94 = por %p92, %p93
    %p95 = scmp.ne.s32.totalorder %s87, %s90
    %p96 = scmp.eq.s32.totalorder %s9, 0
    %p97 = por %p95, %p96
    %p98 = scmp.ne.s32.totalorder %s87, %s90
    %p99 = scmp.eq.s32.totalorder %s14, 1
    %p100 = por %p98, %p99
    %p101 = scmp.ne.s32.totalorder %s90, %s91
    %p102 = scmp.eq.s32.totalorder %s14, 0
    %p103 = por %p101, %p102
    %p104 = scmp.ne.s32.totalorder %s90, %s91
    %p105 = scmp.eq.s32.totalorder %s15, 1
    %p106 = por %p104, %p105
    %p108 = scmp.ne.s32.totalorder %s91, %s107
    %p109 = scmp.eq.s32.totalorder %s15, 0
    %p110 = por %p108, %p109
    %p111 = scmp.le.s32.totalorder 1, %s9
    %p112 = scmp.lt.s32.totalorder %s9, 3
    %p113 = pnand %p111, %p112
    %p114 = pneg %p113
    // Predicated region
    $region9: #{pano_speaker_encoder_forward.4} parent=5 // pred_check
      _
    $region10: #{pano_speaker_encoder_forward.4} parent=5 // pred_check_branch
      %116 = sbr.rel (%p113) target = $region12
    $region11: #{pano_speaker_encoder_forward.4} parent=5 // pred_region
      %s117 = ssub.s32 %s9, 1
      // Predicated region
      $region13: #{pano_speaker_encoder_forward.4} parent=11 // pred_check
        %p118 = pneg %p56
      $region14: #{pano_speaker_encoder_forward.4} parent=11 // pred_check_branch
        %120 = sbr.rel (%p118) target = $region16
      $region15: #{pano_speaker_encoder_forward.4} parent=11 // pred_region
        _
      $region16: #{pano_speaker_encoder_forward.4} parent=11 // pred_fallthru
        _
      // Predicated region
      $region17: #{pano_speaker_encoder_forward.4} parent=11 // pred_check
        %p121 = pneg %p77
      $region18: #{pano_speaker_encoder_forward.4} parent=11 // pred_check_branch
        %123 = sbr.rel (%p121) target = $region20
      $region19: #{pano_speaker_encoder_forward.4} parent=11 // pred_region
        _
      $region20: #{pano_speaker_encoder_forward.4} parent=11 // pred_fallthru
        _
    $region12: #{pano_speaker_encoder_forward.4} parent=5 // pred_fallthru
      _
    %p124 = scmp.lt.s32.totalorder %s9, 2
    // Predicated region
    $region21: #{pano_speaker_encoder_forward.4} parent=5 // pred_check
      %p125 = pneg %p124
    $region22: #{pano_speaker_encoder_forward.4} parent=5 // pred_check_branch
      %127 = sbr.rel (%p125) target = $region24
    $region23: #{pano_speaker_encoder_forward.4} parent=5 // pred_region
      // Predicated region
      $region25: #{pano_speaker_encoder_forward.4} parent=23 // pred_check
        %p128 = pneg %p29
      $region26: #{pano_speaker_encoder_forward.4} parent=23 // pred_check_branch
        %130 = sbr.rel (%p128) target = $region28
      $region27: #{pano_speaker_encoder_forward.4} parent=23 // pred_region
        %p131 = scmp.lt.s32.totalorder %s9, 1
        %s132 = scalar_select %p131, %s9, 1
        %s133 = smul.addr %s132, 72
        %s134 = smul.addr %s133, 8
        %s135 = scalar_lea.vmem %s0, %s134
      $region28: #{pano_speaker_encoder_forward.4} parent=23 // pred_fallthru
        _
    $region24: #{pano_speaker_encoder_forward.4} parent=5 // pred_fallthru
      _
    %p136 = scmp.le.s32.totalorder 1, %s9
    %p137 = scmp.lt.s32.totalorder %s9, 3
    %p138 = pnand %p136, %p137
    %p139 = pneg %p138
    // Predicated region
    $region29: #{pano_speaker_encoder_forward.4} parent=5 // pred_check
      _
    $region30: #{pano_speaker_encoder_forward.4} parent=5 // pred_check_branch
      %141 = sbr.rel (%p138) target = $region32
    $region31: #{pano_speaker_encoder_forward.4} parent=5 // pred_region
      %s142 = ssub.s32 %s9, 1
      %p143 = scmp.lt.s32.totalorder %s14, 1
      %s144 = scalar_select %p143, %s14, 1
      %s145 = smul.addr %s144, 72
      %s146 = smul.addr %s145, 8
      %s147 = scalar_lea.vmem %s0, %s146
      %p148 = pneg %p35
      %p149 = pneg %p32
      %p150 = pneg %p56
      %p151 = pneg %p53
      %p152 = pneg %p77
      %p153 = pneg %p74
      %p154 = pneg %p103
      %p155 = pneg %p100
      %p156 = scmp.lt.s32.totalorder %s14, 1
      %s157 = scalar_select %p156, %s14, 1
      %s158 = smul.addr %s157, 18
      %s159 = smul.addr %s158, 8
      %s160 = scalar_lea.vmem %s3, %s159
      %p161 = scmp.lt.s32.totalorder %s14, 1
      %s162 = scalar_select %p161, %s14, 1
      %s163 = smul.addr %s162, 72
      %s164 = smul.addr %s163, 8
      %s165 = scalar_lea.vmem %s0, %s164
      %p166 = scmp.lt.s32.totalorder %s14, 1
      %s167 = scalar_select %p166, %s14, 1
      %s168 = smul.addr %s167, 18
      %s169 = smul.addr %s168, 8
      %s170 = scalar_lea.vmem %s3, %s169
      %v171 = vld [vmem:[%s165] sm:$0xff]
      %v172 = vld [vmem:[%s165 + $0x8] sm:$0xff]
      %v173 = vld [vmem:[%s165 + $0x10] sm:$0xff]
      %v174 = vld [vmem:[%s165 + $0x18] sm:$0xff]
      %v175 = vld [vmem:[%s165 + $0x20] sm:$0xff]
      %v176 = vld [vmem:[%s165 + $0x28] sm:$0xff]
      %v177 = vld [vmem:[%s165 + $0x30] sm:$0xff]
      %v178 = vld [vmem:[%s165 + $0x38] sm:$0xff]
      %v179 = vld [vmem:[%s165 + $0x40] sm:$0xff]
      %v180 = vld [vmem:[%s165 + $0x48] sm:$0xff]
      %v181 = vld [vmem:[%s165 + $0x50] sm:$0xff]
      %v182 = vld [vmem:[%s165 + $0x58] sm:$0xff]
      %v183 = vld [vmem:[%s165 + $0x60] sm:$0xff]
      %v184 = vld [vmem:[%s165 + $0x68] sm:$0xff]
      %v185 = vld [vmem:[%s165 + $0x70] sm:$0xff]
      %v186 = vld [vmem:[%s165 + $0x78] sm:$0xff]
      %v187 = vld [vmem:[%s165 + $0x80] sm:$0xff]
      %v188 = vld [vmem:[%s165 + $0x88] sm:$0xff]
      %v189 = vld [vmem:[%s165 + $0x90] sm:$0xff]
      %v190 = vld [vmem:[%s165 + $0x98] sm:$0xff]
      %v191 = vld [vmem:[%s165 + $0xa0] sm:$0xff]
      %v192 = vld [vmem:[%s165 + $0xa8] sm:$0xff]
      %v193 = vld [vmem:[%s165 + $0xb0] sm:$0xff]
      %v194 = vld [vmem:[%s165 + $0xb8] sm:$0xff]
      %v195 = vld [vmem:[%s165 + $0xc0] sm:$0xff]
      %v196 = vld [vmem:[%s165 + $0xc8] sm:$0xff]
      %v197 = vld [vmem:[%s165 + $0xd0] sm:$0xff]
      %v198 = vld [vmem:[%s165 + $0xd8] sm:$0xff]
      %v199 = vld [vmem:[%s165 + $0xe0] sm:$0xff]
      %v200 = vld [vmem:[%s165 + $0xe8] sm:$0xff]
      %v201 = vld [vmem:[%s165 + $0xf0] sm:$0xff]
      %v202 = vld [vmem:[%s165 + $0xf8] sm:$0xff]
      %v203 = vld [vmem:[%s165 + $0x100] sm:$0xff]
      %v204 = vld [vmem:[%s165 + $0x108] sm:$0xff]
      %v205 = vld [vmem:[%s165 + $0x110] sm:$0xff]
      %v206 = vld [vmem:[%s165 + $0x118] sm:$0xff]
      %v207 = vld [vmem:[%s165 + $0x120] sm:$0xff]
      %v208 = vld [vmem:[%s165 + $0x128] sm:$0xff]
      %v209 = vld [vmem:[%s165 + $0x130] sm:$0xff]
      %v210 = vld [vmem:[%s165 + $0x138] sm:$0xff]
      %v211 = vld [vmem:[%s165 + $0x140] sm:$0xff]
      %v212 = vld [vmem:[%s165 + $0x148] sm:$0xff]
      %v213 = vld [vmem:[%s165 + $0x150] sm:$0xff]
      %v214 = vld [vmem:[%s165 + $0x158] sm:$0xff]
      %v215 = vld [vmem:[%s165 + $0x160] sm:$0xff]
      %v216 = vld [vmem:[%s165 + $0x168] sm:$0xff]
      %v217 = vld [vmem:[%s165 + $0x170] sm:$0xff]
      %v218 = vld [vmem:[%s165 + $0x178] sm:$0xff]
      %v219 = vld [vmem:[%s165 + $0x180] sm:$0xff]
      %v220 = vld [vmem:[%s165 + $0x188] sm:$0xff]
      %v221 = vld [vmem:[%s165 + $0x190] sm:$0xff]
      %v222 = vld [vmem:[%s165 + $0x198] sm:$0xff]
      %v223 = vld [vmem:[%s165 + $0x1a0] sm:$0xff]
      %v224 = vld [vmem:[%s165 + $0x1a8] sm:$0xff]
      %v225 = vld [vmem:[%s165 + $0x1b0] sm:$0xff]
      %v226 = vld [vmem:[%s165 + $0x1b8] sm:$0xff]
      %v227 = vld [vmem:[%s165 + $0x1c0] sm:$0xff]
      %v228 = vld [vmem:[%s165 + $0x1c8] sm:$0xff]
      %v229 = vld [vmem:[%s165 + $0x1d0] sm:$0xff]
      %v230 = vld [vmem:[%s165 + $0x1d8] sm:$0xff]
      %v231 = vld [vmem:[%s165 + $0x1e0] sm:$0xff]
      %v232 = vld [vmem:[%s165 + $0x1e8] sm:$0xff]
      %v233 = vld [vmem:[%s165 + $0x1f0] sm:$0xff]
      %v234 = vld [vmem:[%s165 + $0x1f8] sm:$0xff]
      %v235 = vld [vmem:[%s165 + $0x200] sm:$0xff]
      %v236 = vld [vmem:[%s165 + $0x208] sm:$0xff]
      %v237 = vld [vmem:[%s165 + $0x210] sm:$0xff]
      %v238 = vld [vmem:[%s165 + $0x218] sm:$0xff]
      %v239 = vld [vmem:[%s165 + $0x220] sm:$0xff]
      %v240 = vld [vmem:[%s165 + $0x228] sm:$0xff]
      %v241 = vld [vmem:[%s165 + $0x230] sm:$0xff]
      %v242 = vld [vmem:[%s165 + $0x238] sm:$0xff]
      %v243 = vld [vmem:[%s1] sm:$0xff]
      %v244 = vld [vmem:[%s1 + $0x8] sm:$0xff]
      %v245 = vld [vmem:[%s1 + $0x10] sm:$0xff]
      %v246 = vld [vmem:[%s1 + $0x18] sm:$0xff]
      %v247 = vld [vmem:[%s1 + $0x20] sm:$0xff]
      %v248 = vld [vmem:[%s1 + $0x28] sm:$0xff]
      %v249 = vld [vmem:[%s1 + $0x30] sm:$0xff]
      %v250 = vld [vmem:[%s1 + $0x38] sm:$0xff]
      %v251 = vld [vmem:[%s1 + $0x40] sm:$0xff]
      %v252 = vld [vmem:[%s1 + $0x48] sm:$0xff]
      %v253 = vld [vmem:[%s1 + $0x50] sm:$0xff]
      %v254 = vld [vmem:[%s1 + $0x58] sm:$0xff]
      %v255 = vld [vmem:[%s1 + $0x60] sm:$0xff]
      %v256 = vld [vmem:[%s1 + $0x68] sm:$0xff]
      %v257 = vld [vmem:[%s1 + $0x70] sm:$0xff]
      %v258 = vld [vmem:[%s1 + $0x78] sm:$0xff]
      %v259 = vld [vmem:[%s1 + $0x80] sm:$0xff]
      %v260 = vld [vmem:[%s1 + $0x88] sm:$0xff]
      %v261 = vld [vmem:[%s1 + $0x90] sm:$0xff]
      %v262 = vld [vmem:[%s1 + $0x98] sm:$0xff]
      %v263 = vld [vmem:[%s1 + $0xa0] sm:$0xff]
      %v264 = vld [vmem:[%s1 + $0xa8] sm:$0xff]
      %v265 = vld [vmem:[%s1 + $0xb0] sm:$0xff]
      %v266 = vld [vmem:[%s1 + $0xb8] sm:$0xff]
      %v267 = vld [vmem:[%s1 + $0xc0] sm:$0xff]
      %v268 = vld [vmem:[%s1 + $0xc8] sm:$0xff]
      %v269 = vld [vmem:[%s1 + $0xd0] sm:$0xff]
      %v270 = vld [vmem:[%s1 + $0xd8] sm:$0xff]
      %v271 = vld [vmem:[%s1 + $0xe0] sm:$0xff]
      %v272 = vld [vmem:[%s1 + $0xe8] sm:$0xff]
      %v273 = vld [vmem:[%s1 + $0xf0] sm:$0xff]
      %v274 = vld [vmem:[%s1 + $0xf8] sm:$0xff]
      %v275 = vld [vmem:[%s1 + $0x100] sm:$0xff]
      %v276 = vld [vmem:[%s1 + $0x108] sm:$0xff]
      %v277 = vld [vmem:[%s1 + $0x110] sm:$0xff]
      %v278 = vld [vmem:[%s1 + $0x118] sm:$0xff]
      %v279 = vld [vmem:[%s1 + $0x120] sm:$0xff]
      %v280 = vld [vmem:[%s1 + $0x128] sm:$0xff]
      %v281 = vld [vmem:[%s1 + $0x130] sm:$0xff]
      %v282 = vld [vmem:[%s1 + $0x138] sm:$0xff]
      %v283 = vld [vmem:[%s1 + $0x140] sm:$0xff]
      %v284 = vld [vmem:[%s1 + $0x148] sm:$0xff]
      %v285 = vld [vmem:[%s1 + $0x150] sm:$0xff]
      %v286 = vld [vmem:[%s1 + $0x158] sm:$0xff]
      %v287 = vld [vmem:[%s1 + $0x160] sm:$0xff]
      %v288 = vld [vmem:[%s1 + $0x168] sm:$0xff]
      %v289 = vld [vmem:[%s1 + $0x170] sm:$0xff]
      %v290 = vld [vmem:[%s1 + $0x178] sm:$0xff]
      %v291 = vld [vmem:[%s1 + $0x180] sm:$0xff]
      %v292 = vld [vmem:[%s1 + $0x188] sm:$0xff]
      %v293 = vld [vmem:[%s1 + $0x190] sm:$0xff]
      %v294 = vld [vmem:[%s1 + $0x198] sm:$0xff]
      %v295 = vld [vmem:[%s1 + $0x1a0] sm:$0xff]
      %v296 = vld [vmem:[%s1 + $0x1a8] sm:$0xff]
      %v297 = vld [vmem:[%s1 + $0x1b0] sm:$0xff]
      %v298 = vld [vmem:[%s1 + $0x1b8] sm:$0xff]
      %v299 = vld [vmem:[%s1 + $0x1c0] sm:$0xff]
      %v300 = vld [vmem:[%s1 + $0x1c8] sm:$0xff]
      %v301 = vld [vmem:[%s1 + $0x1d0] sm:$0x3]
      %v302 = vld [vmem:[%s2] sm:$0x1]
      %v304 = vlaneseq
      %v305 = vshrl.u32 %v304, 7
      %v306 = vsub.s32 0, %v305
      %v307 = vrot.slane %v302, %v306
      %vm309 = vcmask 670720
      %v311 = vsel %vm309, %v174, 0
      %v314 = vsel %vm309, %v178, 0
      %v317 = vsel %vm309, %v182, 0
      %v320 = vsel %vm309, %v186, 0
      %v323 = vsel %vm309, %v190, 0
      %v326 = vsel %vm309, %v194, 0
      %v329 = vsel %vm309, %v198, 0
      %v332 = vsel %vm309, %v202, 0
      %v335 = vsel %vm309, %v206, 0
      %v338 = vsel %vm309, %v210, 0
      %v341 = vsel %vm309, %v214, 0
      %v344 = vsel %vm309, %v218, 0
      %v347 = vsel %vm309, %v222, 0
      %v350 = vsel %vm309, %v226, 0
      %v353 = vsel %vm309, %v230, 0
      %v356 = vsel %vm309, %v234, 0
      %v359 = vsel %vm309, %v238, 0
      %v362 = vsel %vm309, %v242, 0
      %vm364 = vcmask 1041408
      %v366 = vsel %vm364, %v301, 0
      %368 = vmatprep.subr.mxu0 0.0
      %369 = vmatpush1.msra.mxu0 %v243
      %370 = vmatprep.subr.mxu0 0.0
      %371 = vmatpush1.msra.mxu0 %v244
      %372 = vmatprep.subr.mxu0 0.0
      %373 = vmatpush1.msra.mxu0 %v245
      %374 = vmatprep.subr.mxu0 0.0
      %375 = vmatpush1.msra.mxu0 %v246
      %376 = vmatprep.subr.mxu0 0.0
      %377 = vmatpush1.msra.mxu0 %v247
      %378 = vmatprep.subr.mxu0 0.0
      %379 = vmatpush1.msra.mxu0 %v248
      %380 = vmatprep.subr.mxu0 0.0
      %381 = vmatpush1.msra.mxu0 %v249
      %382 = vmatprep.subr.mxu0 0.0
      %383 = vmatpush1.msra.mxu0 %v250
      %384 = vmatprep.subr.mxu0 0.0
      %385 = vmatpush1.msra.mxu0 %v251
      %386 = vmatprep.subr.mxu0 0.0
      %387 = vmatpush1.msra.mxu0 %v252
      %388 = vmatprep.subr.mxu0 0.0
      %389 = vmatpush1.msra.mxu0 %v253
      %390 = vmatprep.subr.mxu0 0.0
      %391 = vmatpush1.msra.mxu0 %v254
      %392 = vmatprep.subr.mxu0 0.0
      %393 = vmatpush1.msra.mxu0 %v255
      %394 = vmatprep.subr.mxu0 0.0
      %395 = vmatpush1.msra.mxu0 %v256
      %396 = vmatprep.subr.mxu0 0.0
      %397 = vmatpush1.msra.mxu0 %v257
      %398 = vmatprep.subr.mxu0 0.0
      %399 = vmatpush1.msra.mxu0 %v258
      %400 = vmatprep.subr.mxu0 0.0
      %401 = vmatpush1.msra.mxu0 %v259
      %402 = vmatprep.subr.mxu0 0.0
      %403 = vmatpush1.msra.mxu0 %v260
      %404 = vmatprep.subr.mxu0 0.0
      %405 = vmatpush1.msra.mxu0 %v261
      %406 = vmatprep.subr.mxu0 0.0
      %407 = vmatpush1.msra.mxu0 %v262
      %408 = vmatprep.subr.mxu0 0.0
      %409 = vmatpush1.msra.mxu0 %v263
      %410 = vmatprep.subr.mxu0 0.0
      %411 = vmatpush1.msra.mxu0 %v264
      %412 = vmatprep.subr.mxu0 0.0
      %413 = vmatpush1.msra.mxu0 %v265
      %414 = vmatprep.subr.mxu0 0.0
      %415 = vmatpush1.msra.mxu0 %v266
      %416 = vmatprep.subr.mxu0 0.0
      %417 = vmatpush1.msra.mxu0 %v267
      %418 = vmatprep.subr.mxu0 0.0
      %419 = vmatpush1.msra.mxu0 %v268
      %420 = vmatprep.subr.mxu0 0.0
      %421 = vmatpush1.msra.mxu0 %v269
      %422 = vmatprep.subr.mxu0 0.0
      %423 = vmatpush1.msra.mxu0 %v270
      %424 = vmatprep.subr.mxu0 0.0
      %425 = vmatpush1.msra.mxu0 %v271
      %426 = vmatprep.subr.mxu0 0.0
      %427 = vmatpush1.msra.mxu0 %v272
      %428 = vmatprep.subr.mxu0 0.0
      %429 = vmatpush1.msra.mxu0 %v273
      %430 = vmatprep.subr.mxu0 0.0
      %431 = vmatpush1.msra.mxu0 %v274
      %432 = vmatprep.mubr.f32.mxu0 %v172
      %433 = vmatmul.mubr.f32.gmra.mrb[0].mxu0 %v171
      %v434 = vpop.f32.mrb[0].mxu0
      %v435 = vadd.f32 %v307, %v434
      %v436 = vpop.f32.mrb[0].mxu0
      %437 = vmatprep.mubr.f32.mxu0 %v176
      %438 = vmatmul.mubr.f32.gmra.mrb[0].mxu0 %v175
      %v439 = vpop.f32.mrb[0].mxu0
      %v440 = vadd.f32 %v307, %v439
      %v441 = vpop.f32.mrb[0].mxu0
      %442 = vmatprep.mubr.f32.mxu0 %v180
      %443 = vmatmul.mubr.f32.gmra.mrb[0].mxu0 %v179
      %v444 = vpop.f32.mrb[0].mxu0
      %v445 = vadd.f32 %v307, %v444
      %v446 = vpop.f32.mrb[0].mxu0
      %447 = vmatprep.mubr.f32.mxu0 %v184
      %448 = vmatmul.mubr.f32.gmra.mrb[0].mxu0 %v183
      %v449 = vpop.f32.mrb[0].mxu0
      %v450 = vadd.f32 %v307, %v449
      %v451 = vpop.f32.mrb[0].mxu0
      %452 = vmatprep.mubr.f32.mxu0 %v188
      %453 = vmatmul.mubr.f32.gmra.mrb[0].mxu0 %v187
      %v454 = vpop.f32.mrb[0].mxu0
      %v455 = vadd.f32 %v307, %v454
      %v456 = vpop.f32.mrb[0].mxu0
      %457 = vmatprep.mubr.f32.mxu0 %v192
      %458 = vmatmul.mubr.f32.gmra.mrb[0].mxu0 %v191
      %v459 = vpop.f32.mrb[0].mxu0
      %v460 = vadd.f32 %v307, %v459
      %v461 = vpop.f32.mrb[0].mxu0
      %462 = vmatprep.mubr.f32.mxu0 %v196
      %463 = vmatmul.mubr.f32.gmra.mrb[0].mxu0 %v195
      %v464 = vpop.f32.mrb[0].mxu0
      %v465 = vadd.f32 %v307, %v464
      %v466 = vpop.f32.mrb[0].mxu0
      %467 = vmatprep.mubr.f32.mxu0 %v200
      %468 = vmatmul.mubr.f32.gmra.mrb[0].mxu0 %v199
      %v469 = vpop.f32.mrb[0].mxu0
      %v470 = vadd.f32 %v307, %v469
      %v471 = vpop.f32.mrb[0].mxu0
      %472 = vmatprep.mubr.f32.mxu0 %v204
      %473 = vmatmul.mubr.f32.gmra.mrb[0].mxu0 %v203
      %v474 = vpop.f32.mrb[0].mxu0
      %v475 = vadd.f32 %v307, %v474
      %v476 = vpop.f32.mrb[0].mxu0
      %477 = vmatprep.mubr.f32.mxu0 %v208
      %478 = vmatmul.mubr.f32.gmra.mrb[0].mxu0 %v207
      %v479 = vpop.f32.mrb[0].mxu0
      %v480 = vadd.f32 %v307, %v479
      %v481 = vpop.f32.mrb[0].mxu0
      %482 = vmatprep.mubr.f32.mxu0 %v212
      %483 = vmatmul.mubr.f32.gmra.mrb[0].mxu0 %v211
      %v484 = vpop.f32.mrb[0].mxu0
      %v485 = vadd.f32 %v307, %v484
      %v486 = vpop.f32.mrb[0].mxu0
      %487 = vmatprep.mubr.f32.mxu0 %v216
      %488 = vmatmul.mubr.f32.gmra.mrb[0].mxu0 %v215
      %v489 = vpop.f32.mrb[0].mxu0
      %v490 = vadd.f32 %v307, %v489
      %v491 = vpop.f32.mrb[0].mxu0
      %492 = vmatprep.mubr.f32.mxu0 %v220
      %493 = vmatmul.mubr.f32.gmra.mrb[0].mxu0 %v219
      %v494 = vpop.f32.mrb[0].mxu0
      %v495 = vadd.f32 %v307, %v494
      %v496 = vpop.f32.mrb[0].mxu0
      %497 = vmatprep.mubr.f32.mxu0 %v224
      %498 = vmatmul.mubr.f32.gmra.mrb[0].mxu0 %v223
      %v499 = vpop.f32.mrb[0].mxu0
      %v500 = vadd.f32 %v307, %v499
      %v501 = vpop.f32.mrb[0].mxu0
      %502 = vmatprep.mubr.f32.mxu0 %v228
      %503 = vmatmul.mubr.f32.gmra.mrb[0].mxu0 %v227
      %v504 = vpop.f32.mrb[0].mxu0
      %v505 = vadd.f32 %v307, %v504
      %v506 = vpop.f32.mrb[0].mxu0
      %507 = vmatprep.mubr.f32.mxu0 %v232
      %508 = vmatmul.mubr.f32.gmra.mrb[0].mxu0 %v231
      %v509 = vpop.f32.mrb[0].mxu0
      %v510 = vadd.f32 %v307, %v509
      %v511 = vpop.f32.mrb[0].mxu0
      %512 = vmatprep.mubr.f32.mxu0 %v236
      %513 = vmatmul.mubr.f32.gmra.mrb[0].mxu0 %v235
      %v514 = vpop.f32.mrb[0].mxu0
      %v515 = vadd.f32 %v307, %v514
      %v516 = vpop.f32.mrb[0].mxu0
      %517 = vmatprep.mubr.f32.mxu0 %v240
      %518 = vmatmul.mubr.f32.gmra.mrb[0].mxu0 %v239
      %v519 = vpop.f32.mrb[0].mxu0
      %v520 = vadd.f32 %v307, %v519
      %v521 = vpop.f32.mrb[0].mxu0
      %522 = vdwg.mxu0
      %523 = vmatprep.subr.mxu0 0.0
      %524 = vmatpush1.msra.mxu0 %v275
      %525 = vmatprep.subr.mxu0 0.0
      %526 = vmatpush1.msra.mxu0 %v276
      %527 = vmatprep.subr.mxu0 0.0
      %528 = vmatpush1.msra.mxu0 %v277
      %529 = vmatprep.subr.mxu0 0.0
      %530 = vmatpush1.msra.mxu0 %v278
      %531 = vmatprep.subr.mxu0 0.0
      %532 = vmatpush1.msra.mxu0 %v279
      %533 = vmatprep.subr.mxu0 0.0
      %534 = vmatpush1.msra.mxu0 %v280
      %535 = vmatprep.subr.mxu0 0.0
      %536 = vmatpush1.msra.mxu0 %v281
      %537 = vmatprep.subr.mxu0 0.0
      %538 = vmatpush1.msra.mxu0 %v282
      %539 = vmatprep.subr.mxu0 0.0
      %540 = vmatpush1.msra.mxu0 %v283
      %541 = vmatprep.subr.mxu0 0.0
      %542 = vmatpush1.msra.mxu0 %v284
      %543 = vmatprep.subr.mxu0 0.0
      %544 = vmatpush1.msra.mxu0 %v285
      %545 = vmatprep.subr.mxu0 0.0
      %546 = vmatpush1.msra.mxu0 %v286
      %547 = vmatprep.subr.mxu0 0.0
      %548 = vmatpush1.msra.mxu0 %v287
      %549 = vmatprep.subr.mxu0 0.0
      %550 = vmatpush1.msra.mxu0 %v288
      %551 = vmatprep.subr.mxu0 0.0
      %552 = vmatpush1.msra.mxu0 %v289
      %553 = vmatprep.subr.mxu0 0.0
      %554 = vmatpush1.msra.mxu0 %v290
      %555 = vmatprep.subr.mxu0 0.0
      %556 = vmatpush1.msra.mxu0 %v291
      %557 = vmatprep.subr.mxu0 0.0
      %558 = vmatpush1.msra.mxu0 %v292
      %559 = vmatprep.subr.mxu0 0.0
      %560 = vmatpush1.msra.mxu0 %v293
      %561 = vmatprep.subr.mxu0 0.0
      %562 = vmatpush1.msra.mxu0 %v294
      %563 = vmatprep.subr.mxu0 0.0
      %564 = vmatpush1.msra.mxu0 %v295
      %565 = vmatprep.subr.mxu0 0.0
      %566 = vmatpush1.msra.mxu0 %v296
      %567 = vmatprep.subr.mxu0 0.0
      %568 = vmatpush1.msra.mxu0 %v297
      %569 = vmatprep.subr.mxu0 0.0
      %570 = vmatpush1.msra.mxu0 %v298
      %571 = vmatprep.subr.mxu0 0.0
      %572 = vmatpush1.msra.mxu0 %v299
      %573 = vmatprep.subr.mxu0 0.0
      %574 = vmatpush1.msra.mxu0 %v300
      %575 = vmatprep.subr.mxu0 0.0
      %576 = vmatpush1.msra.mxu0 %v366
      %577 = vmatprep.subr.mxu0 0.0
      %578 = vmatpush1.msra.mxu0 0.0
      %579 = vmatprep.subr.mxu0 0.0
      %580 = vmatpush1.msra.mxu0 0.0
      %581 = vmatprep.subr.mxu0 0.0
      %582 = vmatpush1.msra.mxu0 0.0
      %583 = vmatprep.subr.mxu0 0.0
      %584 = vmatpush1.msra.mxu0 0.0
      %585 = vmatprep.subr.mxu0 0.0
      %586 = vmatpush1.msra.mxu0 0.0
      %587 = vmatprep.mubr.f32.mxu0 %v311
      %588 = vmatmul.mubr.f32.gmra.mrb[0].mxu0 %v173
      %v589 = vpop.f32.mrb[0].mxu0
      %v590 = vadd.f32 %v435, %v589
      %v591 = vpop.f32.mrb[0].mxu0
      %592 = vmatprep.mubr.f32.mxu0 %v314
      %593 = vmatmul.mubr.f32.gmra.mrb[0].mxu0 %v177
      %v594 = vpop.f32.mrb[0].mxu0
      %v595 = vadd.f32 %v440, %v594
      %v596 = vpop.f32.mrb[0].mxu0
      %597 = vmatprep.mubr.f32.mxu0 %v317
      %598 = vmatmul.mubr.f32.gmra.mrb[0].mxu0 %v181
      %v599 = vpop.f32.mrb[0].mxu0
      %v600 = vadd.f32 %v445, %v599
      %v601 = vpop.f32.mrb[0].mxu0
      %602 = vmatprep.mubr.f32.mxu0 %v320
      %603 = vmatmul.mubr.f32.gmra.mrb[0].mxu0 %v185
      %v604 = vpop.f32.mrb[0].mxu0
      %v605 = vadd.f32 %v450, %v604
      %v606 = vpop.f32.mrb[0].mxu0
      %607 = vmatprep.mubr.f32.mxu0 %v323
      %608 = vmatmul.mubr.f32.gmra.mrb[0].mxu0 %v189
      %v609 = vpop.f32.mrb[0].mxu0
      %v610 = vadd.f32 %v455, %v609
      %v611 = vpop.f32.mrb[0].mxu0
      %612 = vmatprep.mubr.f32.mxu0 %v326
      %613 = vmatmul.mubr.f32.gmra.mrb[0].mxu0 %v193
      %v614 = vpop.f32.mrb[0].mxu0
      %v615 = vadd.f32 %v460, %v614
      %v616 = vpop.f32.mrb[0].mxu0
      %617 = vmatprep.mubr.f32.mxu0 %v329
      %618 = vmatmul.mubr.f32.gmra.mrb[0].mxu0 %v197
      %v619 = vpop.f32.mrb[0].mxu0
      %v620 = vadd.f32 %v465, %v619
      %v621 = vpop.f32.mrb[0].mxu0
      %622 = vmatprep.mubr.f32.mxu0 %v332
      %623 = vmatmul.mubr.f32.gmra.mrb[0].mxu0 %v201
      %v624 = vpop.f32.mrb[0].mxu0
      %v625 = vadd.f32 %v470, %v624
      %v626 = vpop.f32.mrb[0].mxu0
      %627 = vmatprep.mubr.f32.mxu0 %v335
      %628 = vmatmul.mubr.f32.gmra.mrb[0].mxu0 %v205
      %v629 = vpop.f32.mrb[0].mxu0
      %v630 = vadd.f32 %v475, %v629
      %v631 = vpop.f32.mrb[0].mxu0
      %632 = vmatprep.mubr.f32.mxu0 %v338
      %633 = vmatmul.mubr.f32.gmra.mrb[0].mxu0 %v209
      %v634 = vpop.f32.mrb[0].mxu0
      %v635 = vadd.f32 %v480, %v634
      %v636 = vpop.f32.mrb[0].mxu0
      %637 = vmatprep.mubr.f32.mxu0 %v341
      %638 = vmatmul.mubr.f32.gmra.mrb[0].mxu0 %v213
      %v639 = vpop.f32.mrb[0].mxu0
      %v640 = vadd.f32 %v485, %v639
      %v641 = vpop.f32.mrb[0].mxu0
      %642 = vmatprep.mubr.f32.mxu0 %v344
      %643 = vmatmul.mubr.f32.gmra.mrb[0].mxu0 %v217
      %v644 = vpop.f32.mrb[0].mxu0
      %v645 = vadd.f32 %v490, %v644
      %v646 = vpop.f32.mrb[0].mxu0
      %647 = vmatprep.mubr.f32.mxu0 %v347
      %648 = vmatmul.mubr.f32.gmra.mrb[0].mxu0 %v221
      %v649 = vpop.f32.mrb[0].mxu0
      %v650 = vadd.f32 %v495, %v649
      %v651 = vpop.f32.mrb[0].mxu0
      %652 = vmatprep.mubr.f32.mxu0 %v350
      %653 = vmatmul.mubr.f32.gmra.mrb[0].mxu0 %v225
      %v654 = vpop.f32.mrb[0].mxu0
      %v655 = vadd.f32 %v500, %v654
      %v656 = vpop.f32.mrb[0].mxu0
      %657 = vmatprep.mubr.f32.mxu0 %v353
      %658 = vmatmul.mubr.f32.gmra.mrb[0].mxu0 %v229
      %v659 = vpop.f32.mrb[0].mxu0
      %v660 = vadd.f32 %v505, %v659
      %v661 = vpop.f32.mrb[0].mxu0
      %662 = vmatprep.mubr.f32.mxu0 %v356
      %663 = vmatmul.mubr.f32.gmra.mrb[0].mxu0 %v233
      %v664 = vpop.f32.mrb[0].mxu0
      %v665 = vadd.f32 %v510, %v664
      %v666 = vpop.f32.mrb[0].mxu0
      %667 = vmatprep.mubr.f32.mxu0 %v359
      %668 = vmatmul.mubr.f32.gmra.mrb[0].mxu0 %v237
      %v669 = vpop.f32.mrb[0].mxu0
      %v670 = vadd.f32 %v515, %v669
      %v671 = vpop.f32.mrb[0].mxu0
      %672 = vmatprep.mubr.f32.mxu0 %v362
      %673 = vmatmul.mubr.f32.gmra.mrb[0].mxu0 %v241
      %v674 = vpop.f32.mrb[0].mxu0
      %v675 = vadd.f32 %v520, %v674
      %v676 = vpop.f32.mrb[0].mxu0
      %677 = vdwg.mxu0
      %v678 = vtanh.pop %v590
      %v679 = vtanh.pop %v595
      %v680 = vtanh.pop %v600
      %v681 = vtanh.pop %v605
      %v682 = vtanh.pop %v610
      %v683 = vtanh.pop %v615
      %v684 = vtanh.pop %v620
      %v685 = vtanh.pop %v625
      %v686 = vtanh.pop %v630
      %v687 = vtanh.pop %v635
      %v688 = vtanh.pop %v640
      %v689 = vtanh.pop %v645
      %v690 = vtanh.pop %v650
      %v691 = vtanh.pop %v655
      %v692 = vtanh.pop %v660
      %v693 = vtanh.pop %v665
      %v694 = vtanh.pop %v670
      %v695 = vtanh.pop %v675
      %vm696 = vcmask 261120
      %697 = vst.msk [vmem:[%s170] sm:$0xff] %vm696, %v678
      %698 = vst.msk [vmem:[%s170 + $0x8] sm:$0xff] %vm696, %v679
      %699 = vst.msk [vmem:[%s170 + $0x10] sm:$0xff] %vm696, %v680
      %700 = vst.msk [vmem:[%s170 + $0x18] sm:$0xff] %vm696, %v681
      %701 = vst.msk [vmem:[%s170 + $0x20] sm:$0xff] %vm696, %v682
      %702 = vst.msk [vmem:[%s170 + $0x28] sm:$0xff] %vm696, %v683
      %703 = vst.msk [vmem:[%s170 + $0x30] sm:$0xff] %vm696, %v684
      %704 = vst.msk [vmem:[%s170 + $0x38] sm:$0xff] %vm696, %v685
      %705 = vst.msk [vmem:[%s170 + $0x40] sm:$0xff] %vm696, %v686
      %706 = vst.msk [vmem:[%s170 + $0x48] sm:$0xff] %vm696, %v687
      %707 = vst.msk [vmem:[%s170 + $0x50] sm:$0xff] %vm696, %v688
      %708 = vst.msk [vmem:[%s170 + $0x58] sm:$0xff] %vm696, %v689
      %709 = vst.msk [vmem:[%s170 + $0x60] sm:$0xff] %vm696, %v690
      %710 = vst.msk [vmem:[%s170 + $0x68] sm:$0xff] %vm696, %v691
      %711 = vst.msk [vmem:[%s170 + $0x70] sm:$0xff] %vm696, %v692
      %712 = vst.msk [vmem:[%s170 + $0x78] sm:$0xff] %vm696, %v693
      %713 = vst.msk [vmem:[%s170 + $0x80] sm:$0xff] %vm696, %v694
      %714 = vst.msk [vmem:[%s170 + $0x88] sm:$0xff] %vm696, %v695
      %p715 = scmp.lt.s32.totalorder %s14, 1
      %s716 = scalar_select %p715, %s14, 1
      %s717 = smul.addr %s716, 18
      %s718 = smul.addr %s717, 8
      %s719 = scalar_lea.vmem %s3, %s718
      // Predicated region
      $region33: #{pano_speaker_encoder_forward.4} parent=31 // pred_check
        %p720 = pneg %p100
      $region34: #{pano_speaker_encoder_forward.4} parent=31 // pred_check_branch
        %722 = sbr.rel (%p720) target = $region36
      $region35: #{pano_speaker_encoder_forward.4} parent=31 // pred_region
        _
      $region36: #{pano_speaker_encoder_forward.4} parent=31 // pred_fallthru
        _
    $region32: #{pano_speaker_encoder_forward.4} parent=5 // pred_fallthru
      _
    %p723 = scmp.le.s32.totalorder 2, %s9
    // Predicated region
    $region37: #{pano_speaker_encoder_forward.4} parent=5 // pred_check
      %p724 = pneg %p723
    $region38: #{pano_speaker_encoder_forward.4} parent=5 // pred_check_branch
      %726 = sbr.rel (%p724) target = $region40
    $region39: #{pano_speaker_encoder_forward.4} parent=5 // pred_region
      %s727 = ssub.s32 %s9, 2
      // Predicated region
      $region41: #{pano_speaker_encoder_forward.4} parent=39 // pred_check
        %p728 = pneg %p106
      $region42: #{pano_speaker_encoder_forward.4} parent=39 // pred_check_branch
        %730 = sbr.rel (%p728) target = $region44
      $region43: #{pano_speaker_encoder_forward.4} parent=39 // pred_region
        %p731 = scmp.lt.s32.totalorder %s15, 1
        %s732 = scalar_select %p731, %s15, 1
        %s733 = smul.addr %s732, 18
        %s734 = smul.addr %s733, 8
        %s735 = scalar_lea.vmem %s3, %s734
      $region44: #{pano_speaker_encoder_forward.4} parent=39 // pred_fallthru
        _
    $region40: #{pano_speaker_encoder_forward.4} parent=5 // pred_fallthru
      _
  $region6: #{pano_speaker_encoder_forward.4} parent=0 // loop_footer
    %s13 = sadd.s32 1, %s9
  $region7: #{pano_speaker_encoder_forward.4} parent=0 // loop_footer_branch
    %8 = sbr.rel target = $region3
  $region8: #{pano_speaker_encoder_forward.4} parent=0 // loop_exit
    _

</llo_original>
